<compile_context>
chip_gen: v7x
topology: tpu7x:2x2x1
jax: 0.10.0
libtpu: 0.0.40
codegen_flags: <defaults>
</compile_context>

<pallas_src>
import functools

import jax
import jax.numpy as jnp
from jax.experimental import pallas as pl
from jax.experimental.pallas import tpu as pltpu


def _gat_fused_kernel(x_ref, w1_ref, a1d_ref, a1s_ref, b1_ref,
                      w2_ref, a2d_ref, a2s_ref, b2_ref, mb_ref,
                      out_ref,
                      hh1_ref, sdst1_ref, ssrc1_ref, h_ref,
                      hh2_ref, sdst2_ref, ssrc2_ref,
                      *, heads, hidden):
    """Fused GAT forward, row-tiled.

    Grid: (phase, row_tile).  phase 0 = conv1+ELU, phase 1 = conv2.

    x_ref:    (N, F_in)            bf16, resident
    w1_ref:   (F_in, heads*H)      bf16, resident
    a1d/a1s:  (1, heads*H)         f32 attention vectors (dst / src), flattened
    b1_ref:   (1, heads*H)         f32
    w2_ref:   (heads*H, Fp)        bf16 (Fp = f_out padded to 128)
    a2d/a2s:  (1, Fp)              f32 (zero padded)
    b2_ref:   (1, Fp)              f32 (zero padded)
    mb_ref:   (TM, N)              bf16 additive mask rows (0 edge / -1e30)
    out_ref:  (TM, Fp)             f32, lane-dense
    scratches: hh1 (N,heads*H) bf16, sdst1 (N,heads) f32, ssrc1 (heads,N) f32,
               h (N,heads*H) bf16, hh2 (N,Fp) bf16, sdst2 (N,1) f32,
               ssrc2 (1,N) f32
    """
    tm, n = mb_ref.shape
    phase = pl.program_id(0)
    r = pl.program_id(1)
    row0 = pl.multiple_of(r * tm, tm)

    mb = mb_ref[...]                                    # (TM, N) bf16 additive mask

    # ---------------- phase 0: GATConv(F_in -> hidden, heads) + ELU ----------
    @pl.when(phase == 0)
    def _phase0():
        # One-time prep (first row tile): full linear transform + scores.
        @pl.when(r == 0)
        def _prep1():
            hh = jnp.dot(x_ref[...], w1_ref[...],
                         preferred_element_type=jnp.float32)   # (N, heads*H) f32
            hh1_ref[...] = hh.astype(jnp.bfloat16)
            dcols, scols = [], []
            for hd in range(heads):                            # static, small
                seg = hh[:, hd * hidden:(hd + 1) * hidden]
                dcols.append(jnp.sum(
                    seg * a1d_ref[:, hd * hidden:(hd + 1) * hidden],
                    axis=-1, keepdims=True))
                scols.append(jnp.sum(
                    seg * a1s_ref[:, hd * hidden:(hd + 1) * hidden],
                    axis=-1, keepdims=True))
            sdst1_ref[...] = jnp.concatenate(dcols, axis=-1)   # (N, heads)
            ssrc1_ref[...] = jnp.concatenate(scols, axis=-1).T  # (heads, N)

        sdst_tile = sdst1_ref[pl.ds(row0, tm), :]              # (TM, heads)
        hh1_bf = hh1_ref[...]                                  # (N, heads*H) bf16
        b1 = b1_ref[...]
        head_outs = []
        for hd in range(heads):
            # e[i, j] = LeakyReLU(a_dst·Wx_i + a_src·Wx_j, 0.2) + mask[i, j]
            e = sdst_tile[:, hd:hd + 1] + ssrc1_ref[hd:hd + 1, :]   # (TM, N)
            e = jnp.maximum(e, 0.2 * e) + mb
            e = e - jnp.max(e, axis=-1, keepdims=True)
            p = jnp.exp(e)
            alpha = p * pl.reciprocal(jnp.sum(p, axis=-1, keepdims=True),
                                      approx=True)
            agg = jnp.dot(alpha.astype(jnp.bfloat16),
                          hh1_bf[:, hd * hidden:(hd + 1) * hidden],
                          preferred_element_type=jnp.float32)       # (TM, H)
            agg = agg + b1[:, hd * hidden:(hd + 1) * hidden]
            head_outs.append(jnp.where(agg > 0.0, agg, jnp.exp(agg) - 1.0))  # ELU
        # single row-block store into the bf16 h scratch (no 16-lane col writes)
        h_ref[pl.ds(row0, tm), :] = jnp.concatenate(
            head_outs, axis=-1).astype(jnp.bfloat16)
        # out block is revisited (and fully overwritten) in phase 1; keep
        # the phase-0 writeback deterministic.
        out_ref[...] = jnp.zeros(out_ref.shape, out_ref.dtype)

    # ---------------- phase 1: GATConv(heads*H -> f_out, 1 head) -------------
    @pl.when(phase == 1)
    def _phase1():
        @pl.when(r == 0)
        def _prep2():
            hh2 = jnp.dot(h_ref[...], w2_ref[...],
                          preferred_element_type=jnp.float32)   # (N, Fp) f32
            hh2_ref[...] = hh2.astype(jnp.bfloat16)
            sdst2_ref[...] = jnp.sum(hh2 * a2d_ref[...], axis=-1, keepdims=True)
            ssrc2_ref[...] = jnp.sum(hh2 * a2s_ref[...], axis=-1,
                                     keepdims=True).T            # (1, N)

        e2 = sdst2_ref[pl.ds(row0, tm), :] + ssrc2_ref[...]      # (TM, N)
        e2 = jnp.maximum(e2, 0.2 * e2) + mb
        e2 = e2 - jnp.max(e2, axis=-1, keepdims=True)
        p2 = jnp.exp(e2)
        alpha2 = p2 * pl.reciprocal(jnp.sum(p2, axis=-1, keepdims=True),
                                    approx=True)
        out = jnp.dot(alpha2.astype(jnp.bfloat16), hh2_ref[...],
                      preferred_element_type=jnp.float32) + b2_ref[...]
        out_ref[...] = out                                       # (TM, Fp) lane-dense


def gat_forward(x, adj, params, num_heads, row_tile=None):
    """Fused GAT forward (eval mode). adj[i, j] = 1 iff edge j -> i (+ self loops)."""
    n, f_in = x.shape
    heads = num_heads
    hidden = params["a1_src"].shape[1]
    f_out = params["a2_src"].shape[1]
    hd1 = heads * hidden
    f_out_pad = ((f_out + 127) // 128) * 128       # lane-dense output

    if row_tile is None:
        row_tile = n
        for cand in (512, 256, 128, 64, 32, 16):
            if n % cand == 0:
                row_tile = cand
                break
    tm = row_tile if n % row_tile == 0 else n
    # TODO(synk): halve tm on v7x (64 MiB VMEM) vs v5e/v6e (128 MiB).

    # Additive mask bias, bf16 (halves HBM traffic + VMEM for the (N,N) mask).
    mask_bias = jnp.where(adj > 0.0, 0.0, -1e30).astype(jnp.bfloat16)

    # bf16 pre-cast of all MXU operands (f32 accumulation stays in-kernel).
    x_bf = x.astype(jnp.bfloat16)
    w1_bf = params["w1"].astype(jnp.bfloat16)
    w2_bf = jnp.zeros((hd1, f_out_pad), jnp.float32).at[:, :f_out].set(
        params["w2"]).astype(jnp.bfloat16)

    # Attention vectors / biases stay f32 (consumed on the VPU, tiny).
    a1d = params["a1_dst"].reshape(1, hd1).astype(jnp.float32)
    a1s = params["a1_src"].reshape(1, hd1).astype(jnp.float32)
    a2d = jnp.zeros((1, f_out_pad), jnp.float32).at[:, :f_out].set(params["a2_dst"])
    a2s = jnp.zeros((1, f_out_pad), jnp.float32).at[:, :f_out].set(params["a2_src"])
    b1 = params["b1"].astype(jnp.float32)
    b2 = jnp.zeros((1, f_out_pad), jnp.float32).at[:, :f_out].set(params["b2"])

    grid = (2, n // tm)                   # (phase, row tile)
    const = lambda p, r: (0, 0)
    row = lambda p, r: (r, 0)

    kernel = functools.partial(_gat_fused_kernel, heads=heads, hidden=hidden)

    flops = (2 * n * f_in * hd1 + 2 * n * n * hd1
             + 2 * n * hd1 * f_out_pad + 2 * n * n * f_out_pad)
    transcendentals = (heads + 1) * n * n + n * hd1
    bytes_accessed = (2 * n * n * 2 + n * f_in * 2 + f_in * hd1 * 2
                      + hd1 * f_out_pad * 2 + n * f_out_pad * 4)

    est_vmem = (n * f_in * 2 + f_in * hd1 * 2 + hd1 * f_out_pad * 2
                + 2 * tm * n * 2                      # mask tile, double buffered
                + 2 * tm * f_out_pad * 4              # out tile, double buffered
                + 2 * n * hd1 * 2 + n * f_out_pad * 2  # hh1 + h + hh2 scratches
                + (2 * n * heads + 2 * n) * 4          # score scratches
                + 6 * tm * n * 4)                      # live softmax temporaries
    vmem_limit = int(min(96 * 2 ** 20, max(4 * 2 ** 20, 2 * est_vmem)))

    out_pad = pl.pallas_call(
        kernel,
        out_shape=jax.ShapeDtypeStruct((n, f_out_pad), jnp.float32),
        grid=grid,
        in_specs=[
            pl.BlockSpec((n, f_in), const),           # x (resident)
            pl.BlockSpec((f_in, hd1), const),         # w1
            pl.BlockSpec((1, hd1), const),            # a1_dst
            pl.BlockSpec((1, hd1), const),            # a1_src
            pl.BlockSpec((1, hd1), const),            # b1
            pl.BlockSpec((hd1, f_out_pad), const),    # w2 (padded)
            pl.BlockSpec((1, f_out_pad), const),      # a2_dst (padded)
            pl.BlockSpec((1, f_out_pad), const),      # a2_src (padded)
            pl.BlockSpec((1, f_out_pad), const),      # b2 (padded)
            pl.BlockSpec((tm, n), row),               # mask row tiles
        ],
        out_specs=pl.BlockSpec((tm, f_out_pad), row),
        scratch_shapes=[
            pltpu.VMEM((n, hd1), jnp.bfloat16),       # hh1 (layer-1 linear)
            pltpu.VMEM((n, heads), jnp.float32),      # layer-1 dst scores
            pltpu.VMEM((heads, n), jnp.float32),      # layer-1 src scores (transposed)
            pltpu.VMEM((n, hd1), jnp.bfloat16),       # h (ELU output)
            pltpu.VMEM((n, f_out_pad), jnp.bfloat16),  # hh2 (layer-2 linear)
            pltpu.VMEM((n, 1), jnp.float32),          # layer-2 dst scores
            pltpu.VMEM((1, n), jnp.float32),          # layer-2 src scores
        ],
        compiler_params=pltpu.CompilerParams(
            # both axes "arbitrary": phase 1 reads h produced by all phase-0
            # row tiles, so sequential execution is required for correctness.
            dimension_semantics=("arbitrary", "arbitrary"),
            vmem_limit_bytes=vmem_limit),
        cost_estimate=pl.CostEstimate(
            flops=flops, transcendentals=transcendentals,
            bytes_accessed=bytes_accessed),
    )(x_bf, w1_bf, a1d, a1s, b1, w2_bf, a2d, a2s, b2, mask_bias)

    return out_pad[:, :f_out]


def _gat_reference(x, adj, params, heads):
    """Pure-JAX f32 reference (exact softmax) for parity checking."""
    hidden = params["a1_src"].shape[1]
    hh = x @ params["w1"]
    outs = []
    for hd in range(heads):
        seg = hh[:, hd * hidden:(hd + 1) * hidden]
        sd = seg @ params["a1_dst"][hd]
        ss = seg @ params["a1_src"][hd]
        e = sd[:, None] + ss[None, :]
        e = jnp.where(e > 0, e, 0.2 * e)
        e = jnp.where(adj > 0, e, -jnp.inf)
        a = jax.nn.softmax(e, axis=-1)
        outs.append(a @ seg)
    h = jax.nn.elu(jnp.concatenate(outs, axis=-1) + params["b1"])
    hh2 = h @ params["w2"]
    sd2 = hh2 @ params["a2_dst"][0]
    ss2 = hh2 @ params["a2_src"][0]
    e2 = sd2[:, None] + ss2[None, :]
    e2 = jnp.where(e2 > 0, e2, 0.2 * e2)
    e2 = jnp.where(adj > 0, e2, -jnp.inf)
    a2 = jax.nn.softmax(e2, axis=-1)
    return a2 @ hh2 + params["b2"]


def _glorot(key, shape):
    fan_in, fan_out = shape[0], shape[-1]
    lim = (6.0 / (fan_in + fan_out)) ** 0.5
    return jax.random.uniform(key, shape, jnp.float32, -lim, lim)


if __name__ == "__main__":
    key = jax.random.PRNGKey(0)
    N = 32                      # number of graph nodes
    input_size, hidden_size, output_size, num_heads = 8, 16, 4, 2

    k = jax.random.split(key, 8)
    x = jax.random.normal(k[0], (N, input_size), jnp.float32)

    # deterministic ring graph, both directions: edge_index is (2, E)
    src = jnp.arange(N)
    dst = (src + 1) % N
    edge_index = jnp.stack([jnp.concatenate([src, dst]),
                            jnp.concatenate([dst, src])]).astype(jnp.int32)

    # dense adjacency adj[i, j] = 1 iff edge j -> i, plus self-loops (PyG default)
    adj = jnp.zeros((N, N), jnp.float32)
    adj = adj.at[edge_index[1], edge_index[0]].set(1.0)
    adj = adj.at[jnp.arange(N), jnp.arange(N)].set(1.0)

    params = {
        # conv1: GATConv(input_size, hidden_size, heads=num_heads)
        "w1": _glorot(k[1], (input_size, num_heads * hidden_size)),
        "a1_src": _glorot(k[2], (num_heads, hidden_size)),
        "a1_dst": _glorot(k[3], (num_heads, hidden_size)),
        "b1": jnp.zeros((1, num_heads * hidden_size), jnp.float32),
        # conv2: GATConv(hidden_size * num_heads, output_size) (heads=1)
        "w2": _glorot(k[4], (num_heads * hidden_size, output_size)),
        "a2_src": _glorot(k[5], (1, output_size)),
        "a2_dst": _glorot(k[6], (1, output_size)),
        "b2": jnp.zeros((1, output_size), jnp.float32),
    }

    # row_tile=16 -> grid (2, 2): exercises the two-phase, row-tiled pipeline.
    out = gat_forward(x, adj, params, num_heads, row_tile=16)
    out = jax.block_until_ready(out)
    assert out.shape == (N, output_size)
    assert bool(jnp.all(jnp.isfinite(out)))

    ref = _gat_reference(x, adj, params, num_heads)
    max_err = float(jnp.max(jnp.abs(out - ref)))
    # generous tolerance: bf16 matmuls + approx-reciprocal softmax normalization
    assert max_err < 0.2, f"parity failure vs reference: max|err|={max_err}"
    print("KERNEL_OK")
</pallas_src>

<mosaic_0001>
module attributes {stable_mosaic.version = 11 : i64} {
  func.func @_gat_fused_kernel(%arg0: i32, %arg1: i32, %arg2: memref<32x8xbf16, #tpu.memory_space<vmem>>, %arg3: memref<8x32xbf16, #tpu.memory_space<vmem>>, %arg4: memref<1x32xf32, #tpu.memory_space<vmem>>, %arg5: memref<1x32xf32, #tpu.memory_space<vmem>>, %arg6: memref<1x32xf32, #tpu.memory_space<vmem>>, %arg7: memref<32x128xbf16, #tpu.memory_space<vmem>>, %arg8: memref<1x128xf32, #tpu.memory_space<vmem>>, %arg9: memref<1x128xf32, #tpu.memory_space<vmem>>, %arg10: memref<1x128xf32, #tpu.memory_space<vmem>>, %arg11: memref<16x32xbf16, #tpu.memory_space<vmem>>, %arg12: memref<16x128xf32, #tpu.memory_space<vmem>>, %arg13: memref<32x32xbf16, #tpu.memory_space<vmem>>, %arg14: memref<32x2xf32, #tpu.memory_space<vmem>>, %arg15: memref<2x32xf32, #tpu.memory_space<vmem>>, %arg16: memref<32x32xbf16, #tpu.memory_space<vmem>>, %arg17: memref<32x128xbf16, #tpu.memory_space<vmem>>, %arg18: memref<32x1xf32, #tpu.memory_space<vmem>>, %arg19: memref<1x32xf32, #tpu.memory_space<vmem>>) attributes {dimension_semantics = [#tpu.dimension_semantics<arbitrary>, #tpu.dimension_semantics<arbitrary>], iteration_bounds = array<i64: 2, 2>, scalar_prefetch = 0 : i64, scratch_operands = 7 : i64, tpu.core_type = #tpu.core_type<tc>, window_params = [{pipeline_mode = #tpu.pipeline_mode<synchronous>, transform_indices = @transform_0, window_bounds = array<i64: 32, 8>}, {pipeline_mode = #tpu.pipeline_mode<synchronous>, transform_indices = @transform_1, window_bounds = array<i64: 8, 32>}, {pipeline_mode = #tpu.pipeline_mode<synchronous>, transform_indices = @transform_2, window_bounds = array<i64: 1, 32>}, {pipeline_mode = #tpu.pipeline_mode<synchronous>, transform_indices = @transform_3, window_bounds = array<i64: 1, 32>}, {pipeline_mode = #tpu.pipeline_mode<synchronous>, transform_indices = @transform_4, window_bounds = array<i64: 1, 32>}, {pipeline_mode = #tpu.pipeline_mode<synchronous>, transform_indices = @transform_5, window_bounds = array<i64: 32, 128>}, {pipeline_mode = #tpu.pipeline_mode<synchronous>, transform_indices = @transform_6, window_bounds = array<i64: 1, 128>}, {pipeline_mode = #tpu.pipeline_mode<synchronous>, transform_indices = @transform_7, window_bounds = array<i64: 1, 128>}, {pipeline_mode = #tpu.pipeline_mode<synchronous>, transform_indices = @transform_8, window_bounds = array<i64: 1, 128>}, {transform_indices = @transform_9, window_bounds = array<i64: 16, 32>}, {transform_indices = @transform_10, window_bounds = array<i64: 16, 128>}]} {
    %c16_i32 = arith.constant 16 : i32
    %0 = arith.muli %arg1, %c16_i32 : i32
    %1 = tpu.assume_multiple %0, 16 : i32
    %c0 = arith.constant 0 : index
    %c0_0 = arith.constant 0 : index
    %2 = vector.load %arg11[%c0, %c0_0] : memref<16x32xbf16, #tpu.memory_space<vmem>>, vector<16x32xbf16>
    %c0_i32 = arith.constant 0 : i32
    %3 = arith.cmpi eq, %arg0, %c0_i32 : i32
    %4 = arith.extui %3 : i1 to i32
    %c0_i32_1 = arith.constant 0 : i32
    %5 = arith.cmpi ne, %4, %c0_i32_1 : i32
    scf.if %5 {
      %c0_i32_3 = arith.constant 0 : i32
      %9 = arith.cmpi eq, %arg1, %c0_i32_3 : i32
      %10 = arith.extui %9 : i1 to i32
      %c0_i32_4 = arith.constant 0 : i32
      %11 = arith.cmpi ne, %10, %c0_i32_4 : i32
      scf.if %11 {
        %c0_28 = arith.constant 0 : index
        %c0_29 = arith.constant 0 : index
        %86 = vector.load %arg2[%c0_28, %c0_29] : memref<32x8xbf16, #tpu.memory_space<vmem>>, vector<32x8xbf16>
        %c0_30 = arith.constant 0 : index
        %c0_31 = arith.constant 0 : index
        %87 = vector.load %arg3[%c0_30, %c0_31] : memref<8x32xbf16, #tpu.memory_space<vmem>>, vector<8x32xbf16>
        %cst_32 = arith.constant dense<0.000000e+00> : vector<32x32xf32>
        %88 = tpu.matmul %86, %87, %cst_32 {dimension_numbers = #tpu.dot_dimension_numbers<[1], [0], [0], [1], [0, 0, 1, 1], [], []>} : vector<32x8xbf16>, vector<8x32xbf16>, vector<32x32xf32> -> vector<32x32xf32>
        %89 = arith.truncf %88 : vector<32x32xf32> to vector<32x32xbf16>
        %c0_33 = arith.constant 0 : index
        %c0_34 = arith.constant 0 : index
        %90 = vector.load %arg13[%c0_33, %c0_34] : memref<32x32xbf16, #tpu.memory_space<vmem>>, vector<32x32xbf16>
        tpu.vector_store %arg13[%c0_33, %c0_34], %89 {strides = array<i32>} : memref<32x32xbf16, #tpu.memory_space<vmem>>, vector<32x32xbf16>,
        %91 = vector.extract_strided_slice %88 {offsets = [0, 0], sizes = [32, 16], strides = [1, 1]} : vector<32x32xf32> to vector<32x16xf32>
        %c0_35 = arith.constant 0 : index
        %c0_36 = arith.constant 0 : index
        %92 = vector.load %arg4[%c0_35, %c0_36] : memref<1x32xf32, #tpu.memory_space<vmem>>, vector<1x16xf32>
        %93 = vector.broadcast %92 : vector<1x16xf32> to vector<32x16xf32>
        %94 = arith.mulf %91, %93 : vector<32x16xf32>
        %cst_37 = arith.constant dense<0.000000e+00> : vector<32xf32>
        %95 = vector.multi_reduction <add>, %94, %cst_37 [1] : vector<32x16xf32> to vector<32xf32>
        %96 = vector.shape_cast %95 : vector<32xf32> to vector<32x1xf32>
        %c0_38 = arith.constant 0 : index
        %c0_39 = arith.constant 0 : index
        %97 = vector.load %arg5[%c0_38, %c0_39] : memref<1x32xf32, #tpu.memory_space<vmem>>, vector<1x16xf32>
        %98 = vector.broadcast %97 : vector<1x16xf32> to vector<32x16xf32>
        %99 = arith.mulf %91, %98 : vector<32x16xf32>
        %cst_40 = arith.constant dense<0.000000e+00> : vector<32xf32>
        %100 = vector.multi_reduction <add>, %99, %cst_40 [1] : vector<32x16xf32> to vector<32xf32>
        %101 = vector.shape_cast %100 : vector<32xf32> to vector<32x1xf32>
        %102 = vector.extract_strided_slice %88 {offsets = [0, 16], sizes = [32, 16], strides = [1, 1]} : vector<32x32xf32> to vector<32x16xf32>
        %c0_41 = arith.constant 0 : index
        %c16 = arith.constant 16 : index
        %103 = vector.load %arg4[%c0_41, %c16] : memref<1x32xf32, #tpu.memory_space<vmem>>, vector<1x16xf32>
        %104 = vector.broadcast %103 : vector<1x16xf32> to vector<32x16xf32>
        %105 = arith.mulf %102, %104 : vector<32x16xf32>
        %cst_42 = arith.constant dense<0.000000e+00> : vector<32xf32>
        %106 = vector.multi_reduction <add>, %105, %cst_42 [1] : vector<32x16xf32> to vector<32xf32>
        %107 = vector.shape_cast %106 : vector<32xf32> to vector<32x1xf32>
        %c0_43 = arith.constant 0 : index
        %c16_44 = arith.constant 16 : index
        %108 = vector.load %arg5[%c0_43, %c16_44] : memref<1x32xf32, #tpu.memory_space<vmem>>, vector<1x16xf32>
        %109 = vector.broadcast %108 : vector<1x16xf32> to vector<32x16xf32>
        %110 = arith.mulf %102, %109 : vector<32x16xf32>
        %cst_45 = arith.constant dense<0.000000e+00> : vector<32xf32>
        %111 = vector.multi_reduction <add>, %110, %cst_45 [1] : vector<32x16xf32> to vector<32xf32>
        %112 = vector.shape_cast %111 : vector<32xf32> to vector<32x1xf32>
        %113 = tpu.concatenate %96, %107 in 1 : vector<32x1xf32>, vector<32x1xf32> -> vector<32x2xf32>
        %c0_46 = arith.constant 0 : index
        %c0_47 = arith.constant 0 : index
        %114 = vector.load %arg14[%c0_46, %c0_47] : memref<32x2xf32, #tpu.memory_space<vmem>>, vector<32x2xf32>
        tpu.vector_store %arg14[%c0_46, %c0_47], %113 {strides = array<i32>} : memref<32x2xf32, #tpu.memory_space<vmem>>, vector<32x2xf32>,
        %115 = tpu.concatenate %101, %112 in 1 : vector<32x1xf32>, vector<32x1xf32> -> vector<32x2xf32>
        %116 = tpu.transpose %115, [1, 0] : vector<32x2xf32> -> vector<2x32xf32>
        %c0_48 = arith.constant 0 : index
        %c0_49 = arith.constant 0 : index
        %117 = vector.load %arg15[%c0_48, %c0_49] : memref<2x32xf32, #tpu.memory_space<vmem>>, vector<2x32xf32>
        tpu.vector_store %arg15[%c0_48, %c0_49], %116 {strides = array<i32>} : memref<2x32xf32, #tpu.memory_space<vmem>>, vector<2x32xf32>,
      } else {
      }
      %12 = arith.index_cast %1 : i32 to index
      %c0_5 = arith.constant 0 : index
      %13 = vector.load %arg14[%12, %c0_5] : memref<32x2xf32, #tpu.memory_space<vmem>>, vector<16x2xf32>
      %c0_6 = arith.constant 0 : index
      %c0_7 = arith.constant 0 : index
      %14 = vector.load %arg13[%c0_6, %c0_7] : memref<32x32xbf16, #tpu.memory_space<vmem>>, vector<32x32xbf16>
      %c0_8 = arith.constant 0 : index
      %c0_9 = arith.constant 0 : index
      %15 = vector.load %arg6[%c0_8, %c0_9] : memref<1x32xf32, #tpu.memory_space<vmem>>, vector<1x32xf32>
      %16 = vector.extract_strided_slice %13 {offsets = [0, 0], sizes = [16, 1], strides = [1, 1]} : vector<16x2xf32> to vector<16x1xf32>
      %c0_10 = arith.constant 0 : index
      %c0_11 = arith.constant 0 : index
      %17 = vector.load %arg15[%c0_10, %c0_11] : memref<2x32xf32, #tpu.memory_space<vmem>>, vector<1x32xf32>
      %18 = vector.broadcast %16 : vector<16x1xf32> to vector<16x32xf32>
      %19 = vector.broadcast %17 : vector<1x32xf32> to vector<16x32xf32>
      %20 = arith.addf %18, %19 : vector<16x32xf32>
      %cst = arith.constant 2.000000e-01 : f32
      %21 = vector.broadcast %cst : f32 to vector<16x32xf32>
      %22 = arith.mulf %21, %20 : vector<16x32xf32>
      %23 = arith.maximumf %20, %22 : vector<16x32xf32>
      %24 = arith.extf %2 : vector<16x32xbf16> to vector<16x32xf32>
      %25 = arith.addf %23, %24 : vector<16x32xf32>
      %cst_12 = arith.constant dense<0xFF800000> : vector<16xf32>
      %26 = vector.multi_reduction <maximumf>, %25, %cst_12 [1] : vector<16x32xf32> to vector<16xf32>
      %27 = vector.shape_cast %26 : vector<16xf32> to vector<16x1xf32>
      %28 = vector.broadcast %27 : vector<16x1xf32> to vector<16x32xf32>
      %29 = arith.subf %25, %28 : vector<16x32xf32>
      %30 = math.exp %29 : vector<16x32xf32>
      %cst_13 = arith.constant dense<0.000000e+00> : vector<16xf32>
      %31 = vector.multi_reduction <add>, %30, %cst_13 [1] : vector<16x32xf32> to vector<16xf32>
      %32 = vector.shape_cast %31 : vector<16xf32> to vector<16x1xf32>
      %33 = tpu.reciprocal %32 {approx = true} : vector<16x1xf32> -> vector<16x1xf32>
      %34 = vector.broadcast %33 : vector<16x1xf32> to vector<16x32xf32>
      %35 = arith.mulf %30, %34 : vector<16x32xf32>
      %36 = arith.truncf %35 : vector<16x32xf32> to vector<16x32xbf16>
      %37 = vector.extract_strided_slice %14 {offsets = [0, 0], sizes = [32, 16], strides = [1, 1]} : vector<32x32xbf16> to vector<32x16xbf16>
      %cst_14 = arith.constant dense<0.000000e+00> : vector<16x16xf32>
      %38 = tpu.matmul %36, %37, %cst_14 {dimension_numbers = #tpu.dot_dimension_numbers<[1], [0], [0], [1], [0, 0, 1, 1], [], []>} : vector<16x32xbf16>, vector<32x16xbf16>, vector<16x16xf32> -> vector<16x16xf32>
      %39 = vector.extract_strided_slice %15 {offsets = [0, 0], sizes = [1, 16], strides = [1, 1]} : vector<1x32xf32> to vector<1x16xf32>
      %40 = vector.broadcast %39 : vector<1x16xf32> to vector<16x16xf32>
      %41 = arith.addf %38, %40 : vector<16x16xf32>
      %cst_15 = arith.constant 0.000000e+00 : f32
      %42 = vector.broadcast %cst_15 : f32 to vector<16x16xf32>
      %43 = arith.cmpf ogt, %41, %42 : vector<16x16xf32>
      %44 = math.exp %41 : vector<16x16xf32>
      %cst_16 = arith.constant 1.000000e+00 : f32
      %45 = vector.broadcast %cst_16 : f32 to vector<16x16xf32>
      %46 = arith.subf %44, %45 : vector<16x16xf32>
      %47 = arith.select %43, %41, %46 : vector<16x16xi1>, vector<16x16xf32>
      %48 = vector.extract_strided_slice %13 {offsets = [0, 1], sizes = [16, 1], strides = [1, 1]} : vector<16x2xf32> to vector<16x1xf32>
      %c1 = arith.constant 1 : index
      %c0_17 = arith.constant 0 : index
      %49 = vector.load %arg15[%c1, %c0_17] : memref<2x32xf32, #tpu.memory_space<vmem>>, vector<1x32xf32>
      %50 = vector.broadcast %48 : vector<16x1xf32> to vector<16x32xf32>
      %51 = vector.broadcast %49 : vector<1x32xf32> to vector<16x32xf32>
      %52 = arith.addf %50, %51 : vector<16x32xf32>
      %cst_18 = arith.constant 2.000000e-01 : f32
      %53 = vector.broadcast %cst_18 : f32 to vector<16x32xf32>
      %54 = arith.mulf %53, %52 : vector<16x32xf32>
      %55 = arith.maximumf %52, %54 : vector<16x32xf32>
      %56 = arith.extf %2 : vector<16x32xbf16> to vector<16x32xf32>
      %57 = arith.addf %55, %56 : vector<16x32xf32>
      %cst_19 = arith.constant dense<0xFF800000> : vector<16xf32>
      %58 = vector.multi_reduction <maximumf>, %57, %cst_19 [1] : vector<16x32xf32> to vector<16xf32>
      %59 = vector.shape_cast %58 : vector<16xf32> to vector<16x1xf32>
      %60 = vector.broadcast %59 : vector<16x1xf32> to vector<16x32xf32>
      %61 = arith.subf %57, %60 : vector<16x32xf32>
      %62 = math.exp %61 : vector<16x32xf32>
      %cst_20 = arith.constant dense<0.000000e+00> : vector<16xf32>
      %63 = vector.multi_reduction <add>, %62, %cst_20 [1] : vector<16x32xf32> to vector<16xf32>
      %64 = vector.shape_cast %63 : vector<16xf32> to vector<16x1xf32>
      %65 = tpu.reciprocal %64 {approx = true} : vector<16x1xf32> -> vector<16x1xf32>
      %66 = vector.broadcast %65 : vector<16x1xf32> to vector<16x32xf32>
      %67 = arith.mulf %62, %66 : vector<16x32xf32>
      %68 = arith.truncf %67 : vector<16x32xf32> to vector<16x32xbf16>
      %69 = vector.extract_strided_slice %14 {offsets = [0, 16], sizes = [32, 16], strides = [1, 1]} : vector<32x32xbf16> to vector<32x16xbf16>
      %cst_21 = arith.constant dense<0.000000e+00> : vector<16x16xf32>
      %70 = tpu.matmul %68, %69, %cst_21 {dimension_numbers = #tpu.dot_dimension_numbers<[1], [0], [0], [1], [0, 0, 1, 1], [], []>} : vector<16x32xbf16>, vector<32x16xbf16>, vector<16x16xf32> -> vector<16x16xf32>
      %71 = vector.extract_strided_slice %15 {offsets = [0, 16], sizes = [1, 16], strides = [1, 1]} : vector<1x32xf32> to vector<1x16xf32>
      %72 = vector.broadcast %71 : vector<1x16xf32> to vector<16x16xf32>
      %73 = arith.addf %70, %72 : vector<16x16xf32>
      %cst_22 = arith.constant 0.000000e+00 : f32
      %74 = vector.broadcast %cst_22 : f32 to vector<16x16xf32>
      %75 = arith.cmpf ogt, %73, %74 : vector<16x16xf32>
      %76 = math.exp %73 : vector<16x16xf32>
      %cst_23 = arith.constant 1.000000e+00 : f32
      %77 = vector.broadcast %cst_23 : f32 to vector<16x16xf32>
      %78 = arith.subf %76, %77 : vector<16x16xf32>
      %79 = arith.select %75, %73, %78 : vector<16x16xi1>, vector<16x16xf32>
      %80 = tpu.concatenate %47, %79 in 1 : vector<16x16xf32>, vector<16x16xf32> -> vector<16x32xf32>
      %81 = arith.truncf %80 : vector<16x32xf32> to vector<16x32xbf16>
      %82 = arith.index_cast %1 : i32 to index
      %c0_24 = arith.constant 0 : index
      %83 = vector.load %arg16[%82, %c0_24] : memref<32x32xbf16, #tpu.memory_space<vmem>>, vector<16x32xbf16>
      tpu.vector_store %arg16[%82, %c0_24], %81 {strides = array<i32>} : memref<32x32xbf16, #tpu.memory_space<vmem>>, vector<16x32xbf16>,
      %cst_25 = arith.constant 0.000000e+00 : f32
      %84 = vector.broadcast %cst_25 : f32 to vector<16x128xf32>
      %c0_26 = arith.constant 0 : index
      %c0_27 = arith.constant 0 : index
      %85 = vector.load %arg12[%c0_26, %c0_27] : memref<16x128xf32, #tpu.memory_space<vmem>>, vector<16x128xf32>
      tpu.vector_store %arg12[%c0_26, %c0_27], %84 {strides = array<i32>} : memref<16x128xf32, #tpu.memory_space<vmem>>, vector<16x128xf32>,
    } else {
    }
    %c1_i32 = arith.constant 1 : i32
    %6 = arith.cmpi eq, %arg0, %c1_i32 : i32
    %7 = arith.extui %6 : i1 to i32
    %c0_i32_2 = arith.constant 0 : i32
    %8 = arith.cmpi ne, %7, %c0_i32_2 : i32
    scf.if %8 {
      %c0_i32_3 = arith.constant 0 : i32
      %9 = arith.cmpi eq, %arg1, %c0_i32_3 : i32
      %10 = arith.extui %9 : i1 to i32
      %c0_i32_4 = arith.constant 0 : i32
      %11 = arith.cmpi ne, %10, %c0_i32_4 : i32
      scf.if %11 {
        %c0_17 = arith.constant 0 : index
        %c0_18 = arith.constant 0 : index
        %40 = vector.load %arg16[%c0_17, %c0_18] : memref<32x32xbf16, #tpu.memory_space<vmem>>, vector<32x32xbf16>
        %c0_19 = arith.constant 0 : index
        %c0_20 = arith.constant 0 : index
        %41 = vector.load %arg7[%c0_19, %c0_20] : memref<32x128xbf16, #tpu.memory_space<vmem>>, vector<32x128xbf16>
        %cst_21 = arith.constant dense<0.000000e+00> : vector<32x128xf32>
        %42 = tpu.matmul %40, %41, %cst_21 {dimension_numbers = #tpu.dot_dimension_numbers<[1], [0], [0], [1], [0, 0, 1, 1], [], []>} : vector<32x32xbf16>, vector<32x128xbf16>, vector<32x128xf32> -> vector<32x128xf32>
        %43 = arith.truncf %42 : vector<32x128xf32> to vector<32x128xbf16>
        %c0_22 = arith.constant 0 : index
        %c0_23 = arith.constant 0 : index
        %44 = vector.load %arg17[%c0_22, %c0_23] : memref<32x128xbf16, #tpu.memory_space<vmem>>, vector<32x128xbf16>
        tpu.vector_store %arg17[%c0_22, %c0_23], %43 {strides = array<i32>} : memref<32x128xbf16, #tpu.memory_space<vmem>>, vector<32x128xbf16>,
        %c0_24 = arith.constant 0 : index
        %c0_25 = arith.constant 0 : index
        %45 = vector.load %arg8[%c0_24, %c0_25] : memref<1x128xf32, #tpu.memory_space<vmem>>, vector<1x128xf32>
        %46 = vector.broadcast %45 : vector<1x128xf32> to vector<32x128xf32>
        %47 = arith.mulf %42, %46 : vector<32x128xf32>
        %cst_26 = arith.constant dense<0.000000e+00> : vector<32xf32>
        %48 = vector.multi_reduction <add>, %47, %cst_26 [1] : vector<32x128xf32> to vector<32xf32>
        %49 = vector.shape_cast %48 : vector<32xf32> to vector<32x1xf32>
        %c0_27 = arith.constant 0 : index
        %c0_28 = arith.constant 0 : index
        %50 = vector.load %arg18[%c0_27, %c0_28] : memref<32x1xf32, #tpu.memory_space<vmem>>, vector<32x1xf32>
        tpu.vector_store %arg18[%c0_27, %c0_28], %49 {strides = array<i32>} : memref<32x1xf32, #tpu.memory_space<vmem>>, vector<32x1xf32>,
        %c0_29 = arith.constant 0 : index
        %c0_30 = arith.constant 0 : index
        %51 = vector.load %arg9[%c0_29, %c0_30] : memref<1x128xf32, #tpu.memory_space<vmem>>, vector<1x128xf32>
        %52 = vector.broadcast %51 : vector<1x128xf32> to vector<32x128xf32>
        %53 = arith.mulf %42, %52 : vector<32x128xf32>
        %cst_31 = arith.constant dense<0.000000e+00> : vector<32xf32>
        %54 = vector.multi_reduction <add>, %53, %cst_31 [1] : vector<32x128xf32> to vector<32xf32>
        %55 = vector.shape_cast %54 : vector<32xf32> to vector<32x1xf32>
        %56 = tpu.transpose %55, [1, 0] : vector<32x1xf32> -> vector<1x32xf32>
        %c0_32 = arith.constant 0 : index
        %c0_33 = arith.constant 0 : index
        %57 = vector.load %arg19[%c0_32, %c0_33] : memref<1x32xf32, #tpu.memory_space<vmem>>, vector<1x32xf32>
        tpu.vector_store %arg19[%c0_32, %c0_33], %56 {strides = array<i32>} : memref<1x32xf32, #tpu.memory_space<vmem>>, vector<1x32xf32>,
      } else {
      }
      %12 = arith.index_cast %1 : i32 to index
      %c0_5 = arith.constant 0 : index
      %13 = vector.load %arg18[%12, %c0_5] : memref<32x1xf32, #tpu.memory_space<vmem>>, vector<16x1xf32>
      %c0_6 = arith.constant 0 : index
      %c0_7 = arith.constant 0 : index
      %14 = vector.load %arg19[%c0_6, %c0_7] : memref<1x32xf32, #tpu.memory_space<vmem>>, vector<1x32xf32>
      %15 = vector.broadcast %13 : vector<16x1xf32> to vector<16x32xf32>
      %16 = vector.broadcast %14 : vector<1x32xf32> to vector<16x32xf32>
      %17 = arith.addf %15, %16 : vector<16x32xf32>
      %cst = arith.constant 2.000000e-01 : f32
      %18 = vector.broadcast %cst : f32 to vector<16x32xf32>
      %19 = arith.mulf %18, %17 : vector<16x32xf32>
      %20 = arith.maximumf %17, %19 : vector<16x32xf32>
      %21 = arith.extf %2 : vector<16x32xbf16> to vector<16x32xf32>
      %22 = arith.addf %20, %21 : vector<16x32xf32>
      %cst_8 = arith.constant dense<0xFF800000> : vector<16xf32>
      %23 = vector.multi_reduction <maximumf>, %22, %cst_8 [1] : vector<16x32xf32> to vector<16xf32>
      %24 = vector.shape_cast %23 : vector<16xf32> to vector<16x1xf32>
      %25 = vector.broadcast %24 : vector<16x1xf32> to vector<16x32xf32>
      %26 = arith.subf %22, %25 : vector<16x32xf32>
      %27 = math.exp %26 : vector<16x32xf32>
      %cst_9 = arith.constant dense<0.000000e+00> : vector<16xf32>
      %28 = vector.multi_reduction <add>, %27, %cst_9 [1] : vector<16x32xf32> to vector<16xf32>
      %29 = vector.shape_cast %28 : vector<16xf32> to vector<16x1xf32>
      %30 = tpu.reciprocal %29 {approx = true} : vector<16x1xf32> -> vector<16x1xf32>
      %31 = vector.broadcast %30 : vector<16x1xf32> to vector<16x32xf32>
      %32 = arith.mulf %27, %31 : vector<16x32xf32>
      %33 = arith.truncf %32 : vector<16x32xf32> to vector<16x32xbf16>
      %c0_10 = arith.constant 0 : index
      %c0_11 = arith.constant 0 : index
      %34 = vector.load %arg17[%c0_10, %c0_11] : memref<32x128xbf16, #tpu.memory_space<vmem>>, vector<32x128xbf16>
      %cst_12 = arith.constant dense<0.000000e+00> : vector<16x128xf32>
      %35 = tpu.matmul %33, %34, %cst_12 {dimension_numbers = #tpu.dot_dimension_numbers<[1], [0], [0], [1], [0, 0, 1, 1], [], []>} : vector<16x32xbf16>, vector<32x128xbf16>, vector<16x128xf32> -> vector<16x128xf32>
      %c0_13 = arith.constant 0 : index
      %c0_14 = arith.constant 0 : index
      %36 = vector.load %arg10[%c0_13, %c0_14] : memref<1x128xf32, #tpu.memory_space<vmem>>, vector<1x128xf32>
      %37 = vector.broadcast %36 : vector<1x128xf32> to vector<16x128xf32>
      %38 = arith.addf %35, %37 : vector<16x128xf32>
      %c0_15 = arith.constant 0 : index
      %c0_16 = arith.constant 0 : index
      %39 = vector.load %arg12[%c0_15, %c0_16] : memref<16x128xf32, #tpu.memory_space<vmem>>, vector<16x128xf32>
      tpu.vector_store %arg12[%c0_15, %c0_16], %38 {strides = array<i32>} : memref<16x128xf32, #tpu.memory_space<vmem>>, vector<16x128xf32>,
    } else {
    }
    return
  }
  func.func @transform_0(%arg0: i32, %arg1: i32) -> (i32, i32) {
    %c0_i32 = arith.constant 0 : i32
    %c0_i32_0 = arith.constant 0 : i32
    %c0_i32_1 = arith.constant 0 : i32
    return %c0_i32, %c0_i32_0 : i32, i32
  }
  func.func @transform_1(%arg0: i32, %arg1: i32) -> (i32, i32) {
    %c0_i32 = arith.constant 0 : i32
    %c0_i32_0 = arith.constant 0 : i32
    %c0_i32_1 = arith.constant 0 : i32
    return %c0_i32, %c0_i32_0 : i32, i32
  }
  func.func @transform_2(%arg0: i32, %arg1: i32) -> (i32, i32) {
    %c0_i32 = arith.constant 0 : i32
    %c0_i32_0 = arith.constant 0 : i32
    %c0_i32_1 = arith.constant 0 : i32
    return %c0_i32, %c0_i32_0 : i32, i32
  }
  func.func @transform_3(%arg0: i32, %arg1: i32) -> (i32, i32) {
    %c0_i32 = arith.constant 0 : i32
    %c0_i32_0 = arith.constant 0 : i32
    %c0_i32_1 = arith.constant 0 : i32
    return %c0_i32, %c0_i32_0 : i32, i32
  }
  func.func @transform_4(%arg0: i32, %arg1: i32) -> (i32, i32) {
    %c0_i32 = arith.constant 0 : i32
    %c0_i32_0 = arith.constant 0 : i32
    %c0_i32_1 = arith.constant 0 : i32
    return %c0_i32, %c0_i32_0 : i32, i32
  }
  func.func @transform_5(%arg0: i32, %arg1: i32) -> (i32, i32) {
    %c0_i32 = arith.constant 0 : i32
    %c0_i32_0 = arith.constant 0 : i32
    %c0_i32_1 = arith.constant 0 : i32
    return %c0_i32, %c0_i32_0 : i32, i32
  }
  func.func @transform_6(%arg0: i32, %arg1: i32) -> (i32, i32) {
    %c0_i32 = arith.constant 0 : i32
    %c0_i32_0 = arith.constant 0 : i32
    %c0_i32_1 = arith.constant 0 : i32
    return %c0_i32, %c0_i32_0 : i32, i32
  }
  func.func @transform_7(%arg0: i32, %arg1: i32) -> (i32, i32) {
    %c0_i32 = arith.constant 0 : i32
    %c0_i32_0 = arith.constant 0 : i32
    %c0_i32_1 = arith.constant 0 : i32
    return %c0_i32, %c0_i32_0 : i32, i32
  }
  func.func @transform_8(%arg0: i32, %arg1: i32) -> (i32, i32) {
    %c0_i32 = arith.constant 0 : i32
    %c0_i32_0 = arith.constant 0 : i32
    %c0_i32_1 = arith.constant 0 : i32
    return %c0_i32, %c0_i32_0 : i32, i32
  }
  func.func @transform_9(%arg0: i32, %arg1: i32) -> (i32, i32) {
    %c0_i32 = arith.constant 0 : i32
    %c0_i32_0 = arith.constant 0 : i32
    return %arg1, %c0_i32 : i32, i32
  }
  func.func @transform_10(%arg0: i32, %arg1: i32) -> (i32, i32) {
    %c0_i32 = arith.constant 0 : i32
    %c0_i32_0 = arith.constant 0 : i32
    return %arg1, %c0_i32 : i32, i32
  }
}

</mosaic_0001>

<llo_original>
// kernel: tpu_custom_call.1
$region0: #{tpu_custom_call.1}
  #allocation0 [shape = 'u32[]', space=smem, size = 0x4, offset = 0x4, fixed_abs, tag = 'smem constant byte address 0x4 - core index']
  #allocation1 [shape = 'u32[144,128]{1,0:T(1,128)}', space=vmem, size = 0x12000, scoped, tag = 'internal scratch']
  #allocation2 [shape = 'bf16[32,32]{1,0:T(16,128)(2,1)}', space=vmem, size = 0x2000, scoped, tag = 'scratch operand']
  #allocation3 [shape = 'f32[32,2]{1,0:T(8,128)}', space=vmem, size = 0x4000, scoped, tag = 'scratch operand']
  #allocation4 [shape = 'f32[2,32]{1,0:T(2,128)}', space=vmem, size = 0x400, scoped, tag = 'scratch operand']
  #allocation5 [shape = 'bf16[32,32]{1,0:T(16,128)(2,1)}', space=vmem, size = 0x2000, scoped, tag = 'scratch operand']
  #allocation6 [shape = 'bf16[32,128]{1,0:T(16,128)(2,1)}', space=vmem, size = 0x2000, scoped, tag = 'scratch operand']
  #allocation7 [shape = 'f32[32,1]{1,0:T(8,128)}', space=vmem, size = 0x4000, scoped, tag = 'scratch operand']
  #allocation8 [shape = 'f32[1,32]{1,0:T(1,128)}', space=vmem, size = 0x200, scoped, tag = 'scratch operand']
  %s0 = inlined_call_operand.vmem [shape: bf16[32,8], index: 0, kind: input, shape index: {}]
  %s1 = inlined_call_operand.hbm [shape: bf16[8,32], index: 1, kind: input, shape index: {}]
  %s2 = inlined_call_operand.vmem [shape: f32[1,32], index: 2, kind: input, shape index: {}]
  %s3 = inlined_call_operand.vmem [shape: f32[1,32], index: 3, kind: input, shape index: {}]
  %s4 = inlined_call_operand.vmem [shape: f32[1,32], index: 4, kind: input, shape index: {}]
  %s5 = inlined_call_operand.vmem [shape: bf16[32,128], index: 5, kind: input, shape index: {}]
  %s6 = inlined_call_operand.vmem [shape: f32[1,128], index: 6, kind: input, shape index: {}]
  %s7 = inlined_call_operand.vmem [shape: f32[1,128], index: 7, kind: input, shape index: {}]
  %s8 = inlined_call_operand.vmem [shape: f32[1,128], index: 8, kind: input, shape index: {}]
  %s9 = inlined_call_operand.vmem [shape: bf16[32,32], index: 9, kind: input, shape index: {}]
  %s10 = inlined_call_operand.hbm [shape: f32[32,128], index: 10, kind: output, shape index: {}]
  %s11 = sld [smem:[#allocation0]]
  $region93: #{tpu_custom_call.1} parent=0
    _
  %s13 = ssub.s32 1, %s11
  %s14 = scalar_select 0, %s13, %s11
  $region1: #{tpu_custom_call.1} parent=0
    #allocation9 [shape = 'u8[2048]{0}', space=vmem, size = 0x800, scoped, tag = 'input window, operand 1, single buffered']
    #allocation10 [shape = 's32[2]{0}', space=sflag, size = 0x8, scoped, tag = 'scoped memory for tpu_custom_call.1']
    #allocation11 [shape = 's32[2]{0}', space=sflag, size = 0x8, scoped, tag = 'scoped memory for tpu_custom_call.1']
    #allocation12 [shape = 'u8[16384]{0}', space=vmem, size = 0x4000, scoped, tag = 'output window, operand 0']
    %15 = vsyncpa [#allocation10], 0
    %16 = vsyncpa [#allocation11], 0
    %s17 = scalar_lea.sflag [#allocation11], 1
    %18 = vsyncpa %s17, 0
    loop: start=0, step=1, limit=6
    $region2: #{tpu_custom_call.1} parent=1 // loop_pre_header
      _
    $region3: #{tpu_custom_call.1} parent=1 // loop_header
      %s20 = sphi 0, %s24
      %p21 = scmp.ge.s32.totalorder %s20, 6
      %s27 = sphi 0, %s39
      %s28 = sphi 0, %s35
      %s29 = sphi 0, %s27
      %s30 = sphi 0, %s28
      %s31 = sphi 0, %s29
      %s32 = sphi 0, %s30
      %s40 = sphi 0, %s40
      %s42 = sphi 0, %s40
      %s43 = sphi 0, %s42
      %s57 = sphi 0, %s43
      %s61 = sphi 0, %s61
      %s63 = sphi 0, %s61
      %s64 = sphi 0, %s63
      %s78 = sphi 0, %s64
      %s82 = sphi 0, %s82
      %s84 = sphi 0, %s82
      %s85 = sphi 0, %s84
      %s99 = sphi 0, %s85
      %s103 = sphi 0, %s103
      %s105 = sphi 0, %s103
      %s106 = sphi 0, %s105
      %s120 = sphi 0, %s106
      %s124 = sphi 0, %s124
      %s126 = sphi 0, %s124
      %s127 = sphi 0, %s126
      %s141 = sphi 0, %s127
      %s145 = sphi 0, %s145
      %s147 = sphi 0, %s145
      %s148 = sphi 0, %s147
      %s162 = sphi 0, %s148
      %s166 = sphi 0, %s166
      %s168 = sphi 0, %s166
      %s169 = sphi 0, %s168
      %s183 = sphi 0, %s169
      %s187 = sphi 0, %s187
      %s189 = sphi 0, %s187
      %s190 = sphi 0, %s189
      %s204 = sphi 0, %s190
      %s208 = sphi 0, %s208
      %s210 = sphi 0, %s208
      %s211 = sphi 0, %s210
      %s225 = sphi 0, %s211
      %s231 = sphi 0, %s233
      %s234 = sphi 0, %s231
      %s235 = sphi 0, %s234
      %s251 = sphi 0, %s235
      %s257 = sphi 0, %s259
      %s260 = sphi 0, %s257
      %s261 = sphi 0, %s260
      %s277 = sphi 0, %s261
    $region4: #{tpu_custom_call.1} parent=1 // loop_header_branch
      %23 = sbr.rel (%p21) target = $region8
    $region5: #{tpu_custom_call.1} parent=1 // loop_body
      %s25 = ssub.s32 %s20, 1
      %s26 = ssub.s32 %s20, 2
      %s33 = sadd.s32 1, %s28
      %p34 = scmp.ge.s32.totalorder %s33, 2
      %s35 = scalar_select %p34, 0, %s33
      %s36 = sadd.s32 1, %s27
      %s37 = scalar_select %p34, %s36, %s27
      %p38 = scmp.ge.s32.totalorder %s37, 2
      %s39 = scalar_select %p38, 0, %s37
      %s41 = sadd.s32 %s40, 1
      %p44 = scmp.eq.s32.totalorder %s20, 3
      %p45 = scmp.ne.s32.totalorder %s40, %s42
      %p46 = scmp.eq.s32.totalorder %s20, 0
      %p47 = por %p45, %p46
      %p48 = scmp.ne.s32.totalorder %s40, %s42
      %p49 = scmp.eq.s32.totalorder %s25, 3
      %p50 = por %p48, %p49
      %p51 = scmp.ne.s32.totalorder %s42, %s43
      %p52 = scmp.eq.s32.totalorder %s25, 0
      %p53 = por %p51, %p52
      %p54 = scmp.ne.s32.totalorder %s42, %s43
      %p55 = scmp.eq.s32.totalorder %s26, 3
      %p56 = por %p54, %p55
      %p58 = scmp.ne.s32.totalorder %s43, %s57
      %p59 = scmp.eq.s32.totalorder %s26, 0
      %p60 = por %p58, %p59
      %s62 = sadd.s32 %s61, 1
      %p65 = scmp.eq.s32.totalorder %s20, 3
      %p66 = scmp.ne.s32.totalorder %s61, %s63
      %p67 = scmp.eq.s32.totalorder %s20, 0
      %p68 = por %p66, %p67
      %p69 = scmp.ne.s32.totalorder %s61, %s63
      %p70 = scmp.eq.s32.totalorder %s25, 3
      %p71 = por %p69, %p70
      %p72 = scmp.ne.s32.totalorder %s63, %s64
      %p73 = scmp.eq.s32.totalorder %s25, 0
      %p74 = por %p72, %p73
      %p75 = scmp.ne.s32.totalorder %s63, %s64
      %p76 = scmp.eq.s32.totalorder %s26, 3
      %p77 = por %p75, %p76
      %p79 = scmp.ne.s32.totalorder %s64, %s78
      %p80 = scmp.eq.s32.totalorder %s26, 0
      %p81 = por %p79, %p80
      %s83 = sadd.s32 %s82, 1
      %p86 = scmp.eq.s32.totalorder %s20, 3
      %p87 = scmp.ne.s32.totalorder %s82, %s84
      %p88 = scmp.eq.s32.totalorder %s20, 0
      %p89 = por %p87, %p88
      %p90 = scmp.ne.s32.totalorder %s82, %s84
      %p91 = scmp.eq.s32.totalorder %s25, 3
      %p92 = por %p90, %p91
      %p93 = scmp.ne.s32.totalorder %s84, %s85
      %p94 = scmp.eq.s32.totalorder %s25, 0
      %p95 = por %p93, %p94
      %p96 = scmp.ne.s32.totalorder %s84, %s85
      %p97 = scmp.eq.s32.totalorder %s26, 3
      %p98 = por %p96, %p97
      %p100 = scmp.ne.s32.totalorder %s85, %s99
      %p101 = scmp.eq.s32.totalorder %s26, 0
      %p102 = por %p100, %p101
      %s104 = sadd.s32 %s103, 1
      %p107 = scmp.eq.s32.totalorder %s20, 3
      %p108 = scmp.ne.s32.totalorder %s103, %s105
      %p109 = scmp.eq.s32.totalorder %s20, 0
      %p110 = por %p108, %p109
      %p111 = scmp.ne.s32.totalorder %s103, %s105
      %p112 = scmp.eq.s32.totalorder %s25, 3
      %p113 = por %p111, %p112
      %p114 = scmp.ne.s32.totalorder %s105, %s106
      %p115 = scmp.eq.s32.totalorder %s25, 0
      %p116 = por %p114, %p115
      %p117 = scmp.ne.s32.totalorder %s105, %s106
      %p118 = scmp.eq.s32.totalorder %s26, 3
      %p119 = por %p117, %p118
      %p121 = scmp.ne.s32.totalorder %s106, %s120
      %p122 = scmp.eq.s32.totalorder %s26, 0
      %p123 = por %p121, %p122
      %s125 = sadd.s32 %s124, 1
      %p128 = scmp.eq.s32.totalorder %s20, 3
      %p129 = scmp.ne.s32.totalorder %s124, %s126
      %p130 = scmp.eq.s32.totalorder %s20, 0
      %p131 = por %p129, %p130
      %p132 = scmp.ne.s32.totalorder %s124, %s126
      %p133 = scmp.eq.s32.totalorder %s25, 3
      %p134 = por %p132, %p133
      %p135 = scmp.ne.s32.totalorder %s126, %s127
      %p136 = scmp.eq.s32.totalorder %s25, 0
      %p137 = por %p135, %p136
      %p138 = scmp.ne.s32.totalorder %s126, %s127
      %p139 = scmp.eq.s32.totalorder %s26, 3
      %p140 = por %p138, %p139
      %p142 = scmp.ne.s32.totalorder %s127, %s141
      %p143 = scmp.eq.s32.totalorder %s26, 0
      %p144 = por %p142, %p143
      %s146 = sadd.s32 %s145, 1
      %p149 = scmp.eq.s32.totalorder %s20, 3
      %p150 = scmp.ne.s32.totalorder %s145, %s147
      %p151 = scmp.eq.s32.totalorder %s20, 0
      %p152 = por %p150, %p151
      %p153 = scmp.ne.s32.totalorder %s145, %s147
      %p154 = scmp.eq.s32.totalorder %s25, 3
      %p155 = por %p153, %p154
      %p156 = scmp.ne.s32.totalorder %s147, %s148
      %p157 = scmp.eq.s32.totalorder %s25, 0
      %p158 = por %p156, %p157
      %p159 = scmp.ne.s32.totalorder %s147, %s148
      %p160 = scmp.eq.s32.totalorder %s26, 3
      %p161 = por %p159, %p160
      %p163 = scmp.ne.s32.totalorder %s148, %s162
      %p164 = scmp.eq.s32.totalorder %s26, 0
      %p165 = por %p163, %p164
      %s167 = sadd.s32 %s166, 1
      %p170 = scmp.eq.s32.totalorder %s20, 3
      %p171 = scmp.ne.s32.totalorder %s166, %s168
      %p172 = scmp.eq.s32.totalorder %s20, 0
      %p173 = por %p171, %p172
      %p174 = scmp.ne.s32.totalorder %s166, %s168
      %p175 = scmp.eq.s32.totalorder %s25, 3
      %p176 = por %p174, %p175
      %p177 = scmp.ne.s32.totalorder %s168, %s169
      %p178 = scmp.eq.s32.totalorder %s25, 0
      %p179 = por %p177, %p178
      %p180 = scmp.ne.s32.totalorder %s168, %s169
      %p181 = scmp.eq.s32.totalorder %s26, 3
      %p182 = por %p180, %p181
      %p184 = scmp.ne.s32.totalorder %s169, %s183
      %p185 = scmp.eq.s32.totalorder %s26, 0
      %p186 = por %p184, %p185
      %s188 = sadd.s32 %s187, 1
      %p191 = scmp.eq.s32.totalorder %s20, 3
      %p192 = scmp.ne.s32.totalorder %s187, %s189
      %p193 = scmp.eq.s32.totalorder %s20, 0
      %p194 = por %p192, %p193
      %p195 = scmp.ne.s32.totalorder %s187, %s189
      %p196 = scmp.eq.s32.totalorder %s25, 3
      %p197 = por %p195, %p196
      %p198 = scmp.ne.s32.totalorder %s189, %s190
      %p199 = scmp.eq.s32.totalorder %s25, 0
      %p200 = por %p198, %p199
      %p201 = scmp.ne.s32.totalorder %s189, %s190
      %p202 = scmp.eq.s32.totalorder %s26, 3
      %p203 = por %p201, %p202
      %p205 = scmp.ne.s32.totalorder %s190, %s204
      %p206 = scmp.eq.s32.totalorder %s26, 0
      %p207 = por %p205, %p206
      %s209 = sadd.s32 %s208, 1
      %p212 = scmp.eq.s32.totalorder %s20, 3
      %p213 = scmp.ne.s32.totalorder %s208, %s210
      %p214 = scmp.eq.s32.totalorder %s20, 0
      %p215 = por %p213, %p214
      %p216 = scmp.ne.s32.totalorder %s208, %s210
      %p217 = scmp.eq.s32.totalorder %s25, 3
      %p218 = por %p216, %p217
      %p219 = scmp.ne.s32.totalorder %s210, %s211
      %p220 = scmp.eq.s32.totalorder %s25, 0
      %p221 = por %p219, %p220
      %p222 = scmp.ne.s32.totalorder %s210, %s211
      %p223 = scmp.eq.s32.totalorder %s26, 3
      %p224 = por %p222, %p223
      %p226 = scmp.ne.s32.totalorder %s211, %s225
      %p227 = scmp.eq.s32.totalorder %s26, 0
      %p228 = por %p226, %p227
      %s229 = ssub.s32 %s28, %s35
      %p230 = scmp.eq.s32.totalorder %s229, 0
      %s232 = sadd.s32 %s231, 1
      %s233 = scalar_select %p230, %s231, %s232
      %p236 = pneg %p230
      %p237 = scmp.eq.s32.totalorder %s20, 3
      %p238 = por %p236, %p237
      %p239 = scmp.ne.s32.totalorder %s231, %s234
      %p240 = scmp.eq.s32.totalorder %s20, 0
      %p241 = por %p239, %p240
      %p242 = scmp.ne.s32.totalorder %s231, %s234
      %p243 = scmp.eq.s32.totalorder %s25, 3
      %p244 = por %p242, %p243
      %p245 = scmp.ne.s32.totalorder %s234, %s235
      %p246 = scmp.eq.s32.totalorder %s25, 0
      %p247 = por %p245, %p246
      %p248 = scmp.ne.s32.totalorder %s234, %s235
      %p249 = scmp.eq.s32.totalorder %s26, 3
      %p250 = por %p248, %p249
      %p252 = scmp.ne.s32.totalorder %s235, %s251
      %p253 = scmp.eq.s32.totalorder %s26, 0
      %p254 = por %p252, %p253
      %s255 = ssub.s32 %s28, %s35
      %p256 = scmp.eq.s32.totalorder %s255, 0
      %s258 = sadd.s32 %s257, 1
      %s259 = scalar_select %p256, %s257, %s258
      %p262 = pneg %p256
      %p263 = scmp.eq.s32.totalorder %s20, 3
      %p264 = por %p262, %p263
      %p265 = scmp.ne.s32.totalorder %s257, %s260
      %p266 = scmp.eq.s32.totalorder %s20, 0
      %p267 = por %p265, %p266
      %p268 = scmp.ne.s32.totalorder %s257, %s260
      %p269 = scmp.eq.s32.totalorder %s25, 3
      %p270 = por %p268, %p269
      %p271 = scmp.ne.s32.totalorder %s260, %s261
      %p272 = scmp.eq.s32.totalorder %s25, 0
      %p273 = por %p271, %p272
      %p274 = scmp.ne.s32.totalorder %s260, %s261
      %p275 = scmp.eq.s32.totalorder %s26, 3
      %p276 = por %p274, %p275
      %p278 = scmp.ne.s32.totalorder %s261, %s277
      %p279 = scmp.eq.s32.totalorder %s26, 0
      %p280 = por %p278, %p279
      %p281 = scmp.le.s32.totalorder 1, %s20
      %p282 = scmp.lt.s32.totalorder %s20, 5
      %p283 = pnand %p281, %p282
      %p284 = pneg %p283
      // Predicated region
      $region9: #{tpu_custom_call.1} parent=5 // pred_check
        _
      $region10: #{tpu_custom_call.1} parent=5 // pred_check_branch
        %286 = sbr.rel (%p283) target = $region12
      $region11: #{tpu_custom_call.1} parent=5 // pred_region
        %s287 = ssub.s32 %s20, 1
        // Predicated region
        $region13: #{tpu_custom_call.1} parent=11 // pred_check
          %p288 = pneg %p53
        $region14: #{tpu_custom_call.1} parent=11 // pred_check_branch
          %290 = sbr.rel (%p288) target = $region16
        $region15: #{tpu_custom_call.1} parent=11 // pred_region
          _
        $region16: #{tpu_custom_call.1} parent=11 // pred_fallthru
          _
        // Predicated region
        $region17: #{tpu_custom_call.1} parent=11 // pred_check
          %p291 = pneg %p74
        $region18: #{tpu_custom_call.1} parent=11 // pred_check_branch
          %293 = sbr.rel (%p291) target = $region20
        $region19: #{tpu_custom_call.1} parent=11 // pred_region
          %s295 = ssub.s32 64, 64
          %296 = vsyncadd [#allocation10], %s295
          %s298 = sshll.u32 [#allocation9], 4
          %s299 = int_to_ptr.vmem [resolvable:$true] %s298
          %301 = dma.hbm_to_vmem [thread:$0]  %s1, 64, %s299, [#allocation10]
        $region20: #{tpu_custom_call.1} parent=11 // pred_fallthru
          _
        // Predicated region
        $region21: #{tpu_custom_call.1} parent=11 // pred_check
          %p302 = pneg %p95
        $region22: #{tpu_custom_call.1} parent=11 // pred_check_branch
          %304 = sbr.rel (%p302) target = $region24
        $region23: #{tpu_custom_call.1} parent=11 // pred_region
          _
        $region24: #{tpu_custom_call.1} parent=11 // pred_fallthru
          _
        // Predicated region
        $region25: #{tpu_custom_call.1} parent=11 // pred_check
          %p305 = pneg %p116
        $region26: #{tpu_custom_call.1} parent=11 // pred_check_branch
          %307 = sbr.rel (%p305) target = $region28
        $region27: #{tpu_custom_call.1} parent=11 // pred_region
          _
        $region28: #{tpu_custom_call.1} parent=11 // pred_fallthru
          _
        // Predicated region
        $region29: #{tpu_custom_call.1} parent=11 // pred_check
          %p308 = pneg %p137
        $region30: #{tpu_custom_call.1} parent=11 // pred_check_branch
          %310 = sbr.rel (%p308) target = $region32
        $region31: #{tpu_custom_call.1} parent=11 // pred_region
          _
        $region32: #{tpu_custom_call.1} parent=11 // pred_fallthru
          _
        // Predicated region
        $region33: #{tpu_custom_call.1} parent=11 // pred_check
          %p311 = pneg %p158
        $region34: #{tpu_custom_call.1} parent=11 // pred_check_branch
          %313 = sbr.rel (%p311) target = $region36
        $region35: #{tpu_custom_call.1} parent=11 // pred_region
          _
        $region36: #{tpu_custom_call.1} parent=11 // pred_fallthru
          _
        // Predicated region
        $region37: #{tpu_custom_call.1} parent=11 // pred_check
          %p314 = pneg %p179
        $region38: #{tpu_custom_call.1} parent=11 // pred_check_branch
          %316 = sbr.rel (%p314) target = $region40
        $region39: #{tpu_custom_call.1} parent=11 // pred_region
          _
        $region40: #{tpu_custom_call.1} parent=11 // pred_fallthru
          _
        // Predicated region
        $region41: #{tpu_custom_call.1} parent=11 // pred_check
          %p317 = pneg %p200
        $region42: #{tpu_custom_call.1} parent=11 // pred_check_branch
          %319 = sbr.rel (%p317) target = $region44
        $region43: #{tpu_custom_call.1} parent=11 // pred_region
          _
        $region44: #{tpu_custom_call.1} parent=11 // pred_fallthru
          _
        // Predicated region
        $region45: #{tpu_custom_call.1} parent=11 // pred_check
          %p320 = pneg %p221
        $region46: #{tpu_custom_call.1} parent=11 // pred_check_branch
          %322 = sbr.rel (%p320) target = $region48
        $region47: #{tpu_custom_call.1} parent=11 // pred_region
          _
        $region48: #{tpu_custom_call.1} parent=11 // pred_fallthru
          _
      $region12: #{tpu_custom_call.1} parent=5 // pred_fallthru
        _
      %p323 = scmp.lt.s32.totalorder %s20, 4
      // Predicated region
      $region49: #{tpu_custom_call.1} parent=5 // pred_check
        %p324 = pneg %p323
      $region50: #{tpu_custom_call.1} parent=5 // pred_check_branch
        %326 = sbr.rel (%p324) target = $region52
      $region51: #{tpu_custom_call.1} parent=5 // pred_region
        // Predicated region
        $region53: #{tpu_custom_call.1} parent=51 // pred_check
          %p327 = pneg %p241
        $region54: #{tpu_custom_call.1} parent=51 // pred_check_branch
          %329 = sbr.rel (%p327) target = $region56
        $region55: #{tpu_custom_call.1} parent=51 // pred_region
          %s330 = smul.u32 2, %s28
          %p331 = scmp.lt.s32.totalorder %s330, 3
          %s332 = scalar_select %p331, %s330, 3
          %s333 = smul.addr %s332, 4
          %s334 = scalar_lea.vmem %s9, %s333
          %s335 = smul.u32 2, %s28
        $region56: #{tpu_custom_call.1} parent=51 // pred_fallthru
          _
      $region52: #{tpu_custom_call.1} parent=5 // pred_fallthru
        _
      %p336 = scmp.le.s32.totalorder 1, %s20
      %p337 = scmp.lt.s32.totalorder %s20, 5
      %p338 = pnand %p336, %p337
      %p339 = pneg %p338
      // Predicated region
      $region57: #{tpu_custom_call.1} parent=5 // pred_check
        _
      $region58: #{tpu_custom_call.1} parent=5 // pred_check_branch
        %341 = sbr.rel (%p338) target = $region60
      $region59: #{tpu_custom_call.1} parent=5 // pred_region
        %s342 = ssub.s32 %s20, 1
        // Predicated region
        $region61: #{tpu_custom_call.1} parent=59 // pred_check
          %p343 = pneg %p74
        $region62: #{tpu_custom_call.1} parent=59 // pred_check_branch
          %345 = sbr.rel (%p343) target = $region64
        $region63: #{tpu_custom_call.1} parent=59 // pred_region
          %346 = dma.done [#allocation10], 64
        $region64: #{tpu_custom_call.1} parent=59 // pred_fallthru
          _
        %p347 = pneg %p53
        %p348 = pneg %p50
        %p349 = pneg %p74
        %p350 = pneg %p71
        %p351 = pneg %p95
        %p352 = pneg %p92
        %p353 = pneg %p116
        %p354 = pneg %p113
        %p355 = pneg %p137
        %p356 = pneg %p134
        %p357 = pneg %p158
        %p358 = pneg %p155
        %p359 = pneg %p179
        %p360 = pneg %p176
        %p361 = pneg %p200
        %p362 = pneg %p197
        %p363 = pneg %p221
        %p364 = pneg %p218
        %s365 = smul.u32 2, %s30
        %p366 = scmp.lt.s32.totalorder %s365, 3
        %s367 = scalar_select %p366, %s365, 3
        %s368 = smul.addr %s367, 4
        %s369 = scalar_lea.vmem %s9, %s368
        %p370 = pneg %p247
        %p371 = pneg %p244
        %p372 = pneg %p273
        %p373 = pneg %p270
        %s374 = sand.u32 %s260, 1
        %s375 = scalar_lea.sflag [#allocation11], %s374
        %s376 = sand.u32 %s260, 1
        %s377 = smul.addr %s376, 16
        %s378 = scalar_lea.vmem [#allocation12], %s377
        %s379 = smul.u32 2, %s30
        %p380 = scmp.lt.s32.totalorder %s379, 3
        %s381 = scalar_select %p380, %s379, 3
        %s382 = smul.addr %s381, 4
        %s383 = scalar_lea.vmem %s9, %s382
        %s384 = smul.u32 2, %s30
        %s385 = smul.u32 2, %s30
        %s387 = smul.u32 %s30, 16
        %v388 = vld [vmem:[%s383] sm:$0xf]
        %v389 = vld [vmem:[%s383 + $0x4] sm:$0xf]
        %p390 = scmp.eq.s32.totalorder %s29, 0
        // Predicated region
        $region65: #{tpu_custom_call.1} parent=59 // pred_check
          %p391 = pneg %p390
        $region66: #{tpu_custom_call.1} parent=59 // pred_check_branch
          %393 = sbr.rel (%p391) target = $region68
        $region67: #{tpu_custom_call.1} parent=59 // pred_region
          %p394 = scmp.eq.s32.totalorder %s30, 0
          // Predicated region
          $region69: #{tpu_custom_call.1} parent=67 // pred_check
            %p395 = pneg %p394
          $region70: #{tpu_custom_call.1} parent=67 // pred_check_branch
            %397 = sbr.rel (%p395) target = $region72
          $region71: #{tpu_custom_call.1} parent=67 // pred_region
            %v398 = vld [vmem:[%s0] sm:$0xf]
            %v399 = vld [vmem:[%s0 + $0x4] sm:$0xf]
            %v400 = vld [vmem:[%s0 + $0x8] sm:$0xf]
            %v401 = vld [vmem:[%s0 + $0xc] sm:$0xf]
            %v402 = vld [vmem:[#allocation9] sm:$0xf]
            %v407 = vunpack.c.l.b16 %v398
            %v408 = vunpack.c.l.b16 %v399
            %v409 = vunpack.c.l.b16 %v400
            %v410 = vunpack.c.l.b16 %v401
            %v411 = vpack.c.b16 %v408, %v407
            %v412 = vpack.c.b16 %v410, %v409
            %vm413 = vcmask 64512
            %v415 = vsel %vm413, %v411, 0
            %v418 = vsel %vm413, %v412, 0
            %vm420 = vcmask 1043456
            %v422 = vsel %vm420, %v402, 0
            %424 = vmatprep.subr.bf16.mxu0 0
            %425 = vmatpush1.bf16.msra.mxu0 %v422
            %426 = vmatprep.subr.bf16.mxu0 0
            %427 = vmatpush1.bf16.msra.mxu0 0
            %428 = vmatprep.subr.bf16.mxu0 0
            %429 = vmatpush1.bf16.msra.mxu0 0
            %430 = vmatprep.subr.bf16.mxu0 0
            %431 = vmatpush1.bf16.msra.mxu0 0
            %432 = vmatprep.subr.bf16.mxu0 0
            %433 = vmatpush1.bf16.msra.mxu0 0
            %434 = vmatprep.subr.bf16.mxu0 0
            %435 = vmatpush1.bf16.msra.mxu0 0
            %436 = vmatprep.subr.bf16.mxu0 0
            %437 = vmatpush1.bf16.msra.mxu0 0
            %438 = vmatprep.subr.bf16.mxu0 0
            %439 = vmatpush1.bf16.msra.mxu0 0
            %440 = vmatprep.subr.bf16.mxu0 0
            %441 = vmatpush1.bf16.msra.mxu0 0
            %442 = vmatprep.subr.bf16.mxu0 0
            %443 = vmatpush1.bf16.msra.mxu0 0
            %444 = vmatprep.subr.bf16.mxu0 0
            %445 = vmatpush1.bf16.msra.mxu0 0
            %446 = vmatprep.subr.bf16.mxu0 0
            %447 = vmatpush1.bf16.msra.mxu0 0
            %448 = vmatprep.subr.bf16.mxu0 0
            %449 = vmatpush1.bf16.msra.mxu0 0
            %450 = vmatprep.subr.bf16.mxu0 0
            %451 = vmatpush1.bf16.msra.mxu0 0
            %452 = vmatprep.subr.bf16.mxu0 0
            %453 = vmatpush1.bf16.msra.mxu0 0
            %454 = vmatprep.subr.bf16.mxu0 0
            %455 = vmatpush1.bf16.msra.mxu0 0
            %456 = vmatprep.mubr.bf16.mxu0 0
            %457 = vmatmul.mubr.bf16.gmra.mrb[0].mxu0 %v415
            %v458 = vpop.f32.mrb[0].mxu0
            %v459 = vadd.f32 0.0, %v458
            %v460 = vpop.f32.mrb[0].mxu0
            %v461 = vpop.f32.mrb[0].mxu0
            %v462 = vadd.f32 0.0, %v461
            %v463 = vpop.f32.mrb[0].mxu0
            %464 = vmatprep.mubr.bf16.mxu0 0
            %465 = vmatmul.mubr.bf16.gmra.mrb[0].mxu0 %v418
            %v466 = vpop.f32.mrb[0].mxu0
            %v467 = vadd.f32 0.0, %v466
            %v468 = vpop.f32.mrb[0].mxu0
            %v469 = vpop.f32.mrb[0].mxu0
            %v470 = vadd.f32 0.0, %v469
            %v471 = vpop.f32.mrb[0].mxu0
            %472 = vdwg.mxu0
            %v473 = vpack.c.bf16 %v462, %v459
            %v474 = vpack.c.bf16 %v470, %v467
            %vm475 = vcmask 261120
            %476 = vst.msk [vmem:[#allocation2] sm:$0xff] %vm475, %v473
            %477 = vst.msk [vmem:[#allocation2 + $0x8] sm:$0xff] %vm475, %v474
            %v478 = vld [vmem:[%s2] sm:$0x1]
            %v480 = vlaneseq
            %v481 = vshrl.u32 %v480, 7
            %v482 = vsub.s32 0, %v481
            %v483 = vrot.slane %v478, %v482
            %v485 = vmul.f32 %v459, %v483
            %v486 = vmul.f32 %v462, %v483
            %v487 = vmul.f32 %v467, %v483
            %v488 = vmul.f32 %v470, %v483
            %vm489 = vcmask 130048
            %v490 = vsel %vm489, %v485, 0.0
            %491 = vadd.xlane.f32.xlu0 %v490
            %v492 = vpop.xlane.xlu0 %491
            %v493 = vsel %vm489, %v486, 0.0
            %494 = vadd.xlane.f32.xlu0 %v493
            %v495 = vpop.xlane.xlu0 %494
            %v496 = vsel %vm489, %v487, 0.0
            %497 = vadd.xlane.f32.xlu0 %v496
            %v498 = vpop.xlane.xlu0 %497
            %v499 = vsel %vm489, %v488, 0.0
            %500 = vadd.xlane.f32.xlu0 %v499
            %v501 = vpop.xlane.xlu0 %500
            %v502 = vld [vmem:[%s3] sm:$0x1]
            %v504 = vlaneseq
            %v505 = vshrl.u32 %v504, 7
            %v506 = vsub.s32 0, %v505
            %v507 = vrot.slane %v502, %v506
            %v509 = vmul.f32 %v459, %v507
            %v510 = vmul.f32 %v462, %v507
            %v511 = vmul.f32 %v467, %v507
            %v512 = vmul.f32 %v470, %v507
            %v513 = vsel %vm489, %v509, 0.0
            %514 = vadd.xlane.f32.xlu0 %v513
            %v515 = vpop.xlane.xlu0 %514
            %v516 = vsel %vm489, %v510, 0.0
            %517 = vadd.xlane.f32.xlu0 %v516
            %v518 = vpop.xlane.xlu0 %517
            %v519 = vsel %vm489, %v511, 0.0
            %520 = vadd.xlane.f32.xlu0 %v519
            %v521 = vpop.xlane.xlu0 %520
            %v522 = vsel %vm489, %v512, 0.0
            %523 = vadd.xlane.f32.xlu0 %v522
            %v524 = vpop.xlane.xlu0 %523
            %529 = vrot.lane.b32.xlu0 %v485, 112
            %v530 = vpop.permute.xlu0 %529
            %531 = vrot.lane.b32.xlu0 %v486, 112
            %v532 = vpop.permute.xlu0 %531
            %533 = vrot.lane.b32.xlu0 %v487, 112
            %v534 = vpop.permute.xlu0 %533
            %535 = vrot.lane.b32.xlu0 %v488, 112
            %v536 = vpop.permute.xlu0 %535
            %v541 = vsel %vm489, %v530, 0.0
            %542 = vadd.xlane.f32.xlu0 %v541
            %v543 = vpop.xlane.xlu0 %542
            %v544 = vsel %vm489, %v532, 0.0
            %545 = vadd.xlane.f32.xlu0 %v544
            %v546 = vpop.xlane.xlu0 %545
            %v547 = vsel %vm489, %v534, 0.0
            %548 = vadd.xlane.f32.xlu0 %v547
            %v549 = vpop.xlane.xlu0 %548
            %v550 = vsel %vm489, %v536, 0.0
            %551 = vadd.xlane.f32.xlu0 %v550
            %v552 = vpop.xlane.xlu0 %551
            %557 = vrot.lane.b32.xlu0 %v509, 112
            %v558 = vpop.permute.xlu0 %557
            %559 = vrot.lane.b32.xlu0 %v510, 112
            %v560 = vpop.permute.xlu0 %559
            %561 = vrot.lane.b32.xlu0 %v511, 112
            %v562 = vpop.permute.xlu0 %561
            %563 = vrot.lane.b32.xlu0 %v512, 112
            %v564 = vpop.permute.xlu0 %563
            %v569 = vsel %vm489, %v558, 0.0
            %570 = vadd.xlane.f32.xlu0 %v569
            %v571 = vpop.xlane.xlu0 %570
            %v572 = vsel %vm489, %v560, 0.0
            %573 = vadd.xlane.f32.xlu0 %v572
            %v574 = vpop.xlane.xlu0 %573
            %v575 = vsel %vm489, %v562, 0.0
            %576 = vadd.xlane.f32.xlu0 %v575
            %v577 = vpop.xlane.xlu0 %576
            %v578 = vsel %vm489, %v564, 0.0
            %579 = vadd.xlane.f32.xlu0 %v578
            %v580 = vpop.xlane.xlu0 %579
            %vm581 = vcmask 7168
            %v582 = vsel %vm581, %v492, %v543
            %v583 = vsel %vm581, %v495, %v546
            %v584 = vsel %vm581, %v498, %v549
            %v585 = vsel %vm581, %v501, %v552
            %vm586 = vcmask 15360
            %587 = vst.msk [vmem:[#allocation3] sm:$0xff] %vm586, %v582
            %588 = vst.msk [vmem:[#allocation3 + $0x8] sm:$0xff] %vm586, %v583
            %589 = vst.msk [vmem:[#allocation3 + $0x10] sm:$0xff] %vm586, %v584
            %590 = vst.msk [vmem:[#allocation3 + $0x18] sm:$0xff] %vm586, %v585
            %v591 = vsel %vm581, %v515, %v571
            %v592 = vsel %vm581, %v518, %v574
            %v593 = vsel %vm581, %v521, %v577
            %v594 = vsel %vm581, %v524, %v580
            %595 = vxpose.xlu0.b32.start [1/16] %v591, 128
            %596 = vxpose.xlu0.b32.cont [2/16] %v592, 128
            %597 = vxpose.xlu0.b32.cont [3/16] %v593, 128
            %598 = vxpose.xlu0.b32.cont [4/16] %v594, 128
            %599 = vxpose.xlu0.b32.cont [5/16] 0.0, 128
            %600 = vxpose.xlu0.b32.cont [6/16] 0.0, 128
            %601 = vxpose.xlu0.b32.cont [7/16] 0.0, 128
            %602 = vxpose.xlu0.b32.cont [8/16] 0.0, 128
            %603 = vxpose.xlu0.b32.cont [9/16] 0.0, 128
            %604 = vxpose.xlu0.b32.cont [10/16] 0.0, 128
            %605 = vxpose.xlu0.b32.cont [11/16] 0.0, 128
            %606 = vxpose.xlu0.b32.cont [12/16] 0.0, 128
            %607 = vxpose.xlu0.b32.cont [13/16] 0.0, 128
            %608 = vxpose.xlu0.b32.cont [14/16] 0.0, 128
            %609 = vxpose.xlu0.b32.cont [15/16] 0.0, 128
            %610 = vxpose.xlu0.b32.end [16/16] 0.0, 128
            %v611 = vpop.trf.xlu0
            %v612 = vpop.trf.xlu0
            %v613 = vpop.trf.xlu0
            %v614 = vpop.trf.xlu0
            %v615 = vpop.trf.xlu0
            %v616 = vpop.trf.xlu0
            %v617 = vpop.trf.xlu0
            %v618 = vpop.trf.xlu0
            %v619 = vpop.trf.xlu0
            %v620 = vpop.trf.xlu0
            %v621 = vpop.trf.xlu0
            %v622 = vpop.trf.xlu0
            %v623 = vpop.trf.xlu0
            %v624 = vpop.trf.xlu0
            %v625 = vpop.trf.xlu0
            %v626 = vpop.trf.xlu0
            %vm627 = vcmask 254976
            %628 = vst.msk [vmem:[#allocation4] sm:$0x3] %vm627, %v611
          $region72: #{tpu_custom_call.1} parent=67 // pred_fallthru
            _
          %s629 = scalar_lea.vmem [#allocation3], %s387
          %v630 = vld [vmem:[%s629] sm:$0xff]
          %v631 = vld [vmem:[%s629 + $0x8] sm:$0xff]
          %v632 = vld [vmem:[#allocation2] sm:$0xff]
          %v633 = vld [vmem:[#allocation2 + $0x8] sm:$0xff]
          %v634 = vld [vmem:[%s4] sm:$0x1]
          %v635 = vld [vmem:[#allocation4] sm:$0x1]
          %637 = vset.pattern.permute.xlu0 0
          %638 = vperm.xlu0 %637, %v630
          %v639 = vpop.permute.xlu0 %638
          %642 = vset.pattern.permute.xlu0 0
          %643 = vperm.xlu0 %642, %v631
          %v644 = vpop.permute.xlu0 %643
          %v646 = vlaneseq
          %v647 = vshrl.u32 %v646, 7
          %v648 = vsub.s32 0, %v647
          %v649 = vrot.slane %v635, %v648
          %v650 = vadd.f32 %v639, %v649
          %v651 = vadd.f32 %v644, %v649
          %v652 = vmul.f32 %v650, 0.2
          %v653 = vmul.f32 %v651, 0.2
          %v654 = vmax.f32 %v650, %v652
          %v655 = vmax.f32 %v651, %v653
          %v656 = vunpack.c.l.bf16 %v388
          %v657 = vunpack.c.l.bf16 %v389
          %v658 = vadd.f32 %v654, %v656
          %v659 = vadd.f32 %v655, %v657
          %vm660 = vcmask 261120
          %v661 = vsel %vm660, %v658, -inf
          %662 = vmax.xlane.f32.xlu0 %v661
          %v663 = vpop.xlane.xlu0 %662
          %v664 = vsel %vm660, %v659, -inf
          %665 = vmax.xlane.f32.xlu0 %v664
          %v666 = vpop.xlane.xlu0 %665
          %v667 = vsub.f32 %v658, %v663
          %v668 = vsub.f32 %v659, %v666
          %v669 = vmul.f32 %v667, 1.442695
          %v670 = vpow.pop %v669
          %v671 = vmul.f32 %v668, 1.442695
          %v672 = vpow.pop %v671
          %v673 = vsel %vm660, %v670, 0.0
          %674 = vadd.xlane.f32.xlu0 %v673
          %v675 = vpop.xlane.xlu0 %674
          %v676 = vsel %vm660, %v672, 0.0
          %677 = vadd.xlane.f32.xlu0 %v676
          %v678 = vpop.xlane.xlu0 %677
          %v679 = vrcp.pop %v675
          %v680 = vrcp.pop %v678
          %v681 = vmul.f32 %v670, %v679
          %v682 = vmul.f32 %v672, %v680
          %v683 = vpack.c.bf16 %v682, %v681
          %v685 = vlaneseq
          %v686 = vshrl.u32 %v685, 7
          %v687 = vsub.s32 0, %v686
          %v688 = vrot.slane %v634, %v687
          %v691 = vsel %vm660, %v683, 0
          %693 = vmatprep.subr.bf16.mxu0 0
          %694 = vmatpush1.bf16.msra.mxu0 %v632
          %695 = vmatprep.subr.bf16.mxu0 0
          %696 = vmatpush1.bf16.msra.mxu0 %v633
          %697 = vmatprep.subr.bf16.mxu0 0
          %698 = vmatpush1.bf16.msra.mxu0 0
          %699 = vmatprep.subr.bf16.mxu0 0
          %700 = vmatpush1.bf16.msra.mxu0 0
          %701 = vmatprep.subr.bf16.mxu0 0
          %702 = vmatpush1.bf16.msra.mxu0 0
          %703 = vmatprep.subr.bf16.mxu0 0
          %704 = vmatpush1.bf16.msra.mxu0 0
          %705 = vmatprep.subr.bf16.mxu0 0
          %706 = vmatpush1.bf16.msra.mxu0 0
          %707 = vmatprep.subr.bf16.mxu0 0
          %708 = vmatpush1.bf16.msra.mxu0 0
          %709 = vmatprep.subr.bf16.mxu0 0
          %710 = vmatpush1.bf16.msra.mxu0 0
          %711 = vmatprep.subr.bf16.mxu0 0
          %712 = vmatpush1.bf16.msra.mxu0 0
          %713 = vmatprep.subr.bf16.mxu0 0
          %714 = vmatpush1.bf16.msra.mxu0 0
          %715 = vmatprep.subr.bf16.mxu0 0
          %716 = vmatpush1.bf16.msra.mxu0 0
          %717 = vmatprep.subr.bf16.mxu0 0
          %718 = vmatpush1.bf16.msra.mxu0 0
          %719 = vmatprep.subr.bf16.mxu0 0
          %720 = vmatpush1.bf16.msra.mxu0 0
          %721 = vmatprep.subr.bf16.mxu0 0
          %722 = vmatpush1.bf16.msra.mxu0 0
          %723 = vmatprep.subr.bf16.mxu0 0
          %724 = vmatpush1.bf16.msra.mxu0 0
          %725 = vmatprep.mubr.bf16.mxu0 0
          %726 = vmatmul.mubr.bf16.gmra.mrb[0].mxu0 %v691
          %v727 = vpop.f32.mrb[0].mxu0
          %v728 = vadd.f32 %v688, %v727
          %v729 = vpop.f32.mrb[0].mxu0
          %v730 = vpop.f32.mrb[0].mxu0
          %v731 = vadd.f32 %v688, %v730
          %v732 = vpop.f32.mrb[0].mxu0
          %733 = vdwg.mxu0
          %vm734 = vcmp.gt.f32.partialorder %v728, 0.0
          %vm735 = vcmp.gt.f32.partialorder %v731, 0.0
          %v736 = vmul.f32 %v728, 1.442695
          %v737 = vpow.pop %v736
          %v738 = vmul.f32 %v731, 1.442695
          %v739 = vpow.pop %v738
          %v740 = vsub.f32 %v737, 1.0
          %v741 = vsub.f32 %v739, 1.0
          %v742 = vsel %vm734, %v728, %v740
          %v743 = vsel %vm735, %v731, %v741
          %v744 = vld [vmem:[#allocation4 + $0x1] sm:$0x1]
          %745 = vset.pattern.permute.xlu0 1
          %746 = vperm.xlu0 %745, %v630
          %v747 = vpop.permute.xlu0 %746
          %749 = vset.pattern.permute.xlu0 1
          %750 = vperm.xlu0 %749, %v631
          %v751 = vpop.permute.xlu0 %750
          %v753 = vlaneseq
          %v754 = vshrl.u32 %v753, 7
          %v755 = vsub.s32 0, %v754
          %v756 = vrot.slane %v744, %v755
          %v757 = vadd.f32 %v747, %v756
          %v758 = vadd.f32 %v751, %v756
          %v759 = vmul.f32 %v757, 0.2
          %v760 = vmul.f32 %v758, 0.2
          %v761 = vmax.f32 %v757, %v759
          %v762 = vmax.f32 %v758, %v760
          %v763 = vadd.f32 %v761, %v656
          %v764 = vadd.f32 %v762, %v657
          %v765 = vsel %vm660, %v763, -inf
          %766 = vmax.xlane.f32.xlu0 %v765
          %v767 = vpop.xlane.xlu0 %766
          %v768 = vsel %vm660, %v764, -inf
          %769 = vmax.xlane.f32.xlu0 %v768
          %v770 = vpop.xlane.xlu0 %769
          %v771 = vsub.f32 %v763, %v767
          %v772 = vsub.f32 %v764, %v770
          %v773 = vmul.f32 %v771, 1.442695
          %v774 = vpow.pop %v773
          %v775 = vmul.f32 %v772, 1.442695
          %v776 = vpow.pop %v775
          %v777 = vsel %vm660, %v774, 0.0
          %778 = vadd.xlane.f32.xlu0 %v777
          %v779 = vpop.xlane.xlu0 %778
          %v780 = vsel %vm660, %v776, 0.0
          %781 = vadd.xlane.f32.xlu0 %v780
          %v782 = vpop.xlane.xlu0 %781
          %v783 = vrcp.pop %v779
          %v784 = vrcp.pop %v782
          %v785 = vmul.f32 %v774, %v783
          %v786 = vmul.f32 %v776, %v784
          %v787 = vpack.c.bf16 %v786, %v785
          %790 = vrot.lane.b32.xlu0 %v632, 112
          %v791 = vpop.permute.xlu0 %790
          %792 = vrot.lane.b32.xlu0 %v633, 112
          %v793 = vpop.permute.xlu0 %792
          %796 = vrot.lane.b32.xlu0 %v688, 112
          %v797 = vpop.permute.xlu0 %796
          %v800 = vsel %vm660, %v787, 0
          %802 = vmatprep.subr.bf16.mxu0 0
          %803 = vmatpush1.bf16.msra.mxu0 %v791
          %804 = vmatprep.subr.bf16.mxu0 0
          %805 = vmatpush1.bf16.msra.mxu0 %v793
          %806 = vmatprep.subr.bf16.mxu0 0
          %807 = vmatpush1.bf16.msra.mxu0 0
          %808 = vmatprep.subr.bf16.mxu0 0
          %809 = vmatpush1.bf16.msra.mxu0 0
          %810 = vmatprep.subr.bf16.mxu0 0
          %811 = vmatpush1.bf16.msra.mxu0 0
          %812 = vmatprep.subr.bf16.mxu0 0
          %813 = vmatpush1.bf16.msra.mxu0 0
          %814 = vmatprep.subr.bf16.mxu0 0
          %815 = vmatpush1.bf16.msra.mxu0 0
          %816 = vmatprep.subr.bf16.mxu0 0
          %817 = vmatpush1.bf16.msra.mxu0 0
          %818 = vmatprep.subr.bf16.mxu0 0
          %819 = vmatpush1.bf16.msra.mxu0 0
          %820 = vmatprep.subr.bf16.mxu0 0
          %821 = vmatpush1.bf16.msra.mxu0 0
          %822 = vmatprep.subr.bf16.mxu0 0
          %823 = vmatpush1.bf16.msra.mxu0 0
          %824 = vmatprep.subr.bf16.mxu0 0
          %825 = vmatpush1.bf16.msra.mxu0 0
          %826 = vmatprep.subr.bf16.mxu0 0
          %827 = vmatpush1.bf16.msra.mxu0 0
          %828 = vmatprep.subr.bf16.mxu0 0
          %829 = vmatpush1.bf16.msra.mxu0 0
          %830 = vmatprep.subr.bf16.mxu0 0
          %831 = vmatpush1.bf16.msra.mxu0 0
          %832 = vmatprep.subr.bf16.mxu0 0
          %833 = vmatpush1.bf16.msra.mxu0 0
          %834 = vmatprep.mubr.bf16.mxu0 0
          %835 = vmatmul.mubr.bf16.gmra.mrb[0].mxu0 %v800
          %v836 = vpop.f32.mrb[0].mxu0
          %v837 = vadd.f32 %v797, %v836
          %v838 = vpop.f32.mrb[0].mxu0
          %v839 = vpop.f32.mrb[0].mxu0
          %v840 = vadd.f32 %v797, %v839
          %v841 = vpop.f32.mrb[0].mxu0
          %842 = vdwg.mxu0
          %vm843 = vcmp.gt.f32.partialorder %v837, 0.0
          %vm844 = vcmp.gt.f32.partialorder %v840, 0.0
          %v845 = vmul.f32 %v837, 1.442695
          %v846 = vpow.pop %v845
          %v847 = vmul.f32 %v840, 1.442695
          %v848 = vpow.pop %v847
          %v849 = vsub.f32 %v846, 1.0
          %v850 = vsub.f32 %v848, 1.0
          %v851 = vsel %vm843, %v837, %v849
          %v852 = vsel %vm844, %v840, %v850
          %855 = vrot.lane.b32.xlu0 %v851, 16
          %v856 = vpop.permute.xlu0 %855
          %857 = vrot.lane.b32.xlu0 %v852, 16
          %v858 = vpop.permute.xlu0 %857
          %vm861 = vcmask 130048
          %v862 = vsel %vm861, %v742, %v856
          %v863 = vsel %vm861, %v743, %v858
          %v864 = vpack.c.bf16 %v863, %v862
          %s865 = sshra.s32 %s387, 4
          %s866 = sand.u32 %s387, 15
          %s867 = smul.addr %s865, 8
          %s868 = scalar_lea.vmem [#allocation5], %s867
          %869 = vst.msk [vmem:[%s868] sm:$0xff] %vm660, %v864
          %870 = vst [vmem:[%s378] sm:$0xff] 0.0
          %871 = vst [vmem:[%s378 + $0x8] sm:$0xff] 0.0
        $region68: #{tpu_custom_call.1} parent=59 // pred_fallthru
          _
        %p872 = scmp.eq.s32.totalorder %s29, 1
        // Predicated region
        $region73: #{tpu_custom_call.1} parent=59 // pred_check
          %p873 = pneg %p872
        $region74: #{tpu_custom_call.1} parent=59 // pred_check_branch
          %875 = sbr.rel (%p873) target = $region76
        $region75: #{tpu_custom_call.1} parent=59 // pred_region
          %p876 = scmp.eq.s32.totalorder %s30, 0
          // Predicated region
          $region77: #{tpu_custom_call.1} parent=75 // pred_check
            %p877 = pneg %p876
          $region78: #{tpu_custom_call.1} parent=75 // pred_check_branch
            %879 = sbr.rel (%p877) target = $region80
          $region79: #{tpu_custom_call.1} parent=75 // pred_region
            %v880 = vld [vmem:[#allocation5] sm:$0xff]
            %v881 = vld [vmem:[#allocation5 + $0x8] sm:$0xff]
            %v882 = vld [vmem:[%s5] sm:$0xf]
            %v883 = vld [vmem:[%s5 + $0x4] sm:$0xf]
            %v884 = vld [vmem:[%s5 + $0x8] sm:$0xf]
            %v885 = vld [vmem:[%s5 + $0xc] sm:$0xf]
            %v890 = vunpack.c.l.b16 %v882
            %v891 = vunpack.c.l.b16 %v883
            %v892 = vunpack.c.l.b16 %v884
            %v893 = vunpack.c.l.b16 %v885
            %v894 = vpack.c.b16 %v891, %v890
            %v895 = vpack.c.b16 %v893, %v892
            %vm898 = vcmask 261120
            %v900 = vsel %vm898, %v880, 0
            %v903 = vsel %vm898, %v881, 0
            %905 = vmatprep.subr.bf16.mxu0 0
            %906 = vmatpush1.bf16.msra.mxu0 %v894
            %907 = vmatprep.subr.bf16.mxu0 0
            %908 = vmatpush1.bf16.msra.mxu0 %v895
            %909 = vmatprep.subr.bf16.mxu0 0
            %910 = vmatpush1.bf16.msra.mxu0 0
            %911 = vmatprep.subr.bf16.mxu0 0
            %912 = vmatpush1.bf16.msra.mxu0 0
            %913 = vmatprep.subr.bf16.mxu0 0
            %914 = vmatpush1.bf16.msra.mxu0 0
            %915 = vmatprep.subr.bf16.mxu0 0
            %916 = vmatpush1.bf16.msra.mxu0 0
            %917 = vmatprep.subr.bf16.mxu0 0
            %918 = vmatpush1.bf16.msra.mxu0 0
            %919 = vmatprep.subr.bf16.mxu0 0
            %920 = vmatpush1.bf16.msra.mxu0 0
            %921 = vmatprep.subr.bf16.mxu0 0
            %922 = vmatpush1.bf16.msra.mxu0 0
            %923 = vmatprep.subr.bf16.mxu0 0
            %924 = vmatpush1.bf16.msra.mxu0 0
            %925 = vmatprep.subr.bf16.mxu0 0
            %926 = vmatpush1.bf16.msra.mxu0 0
            %927 = vmatprep.subr.bf16.mxu0 0
            %928 = vmatpush1.bf16.msra.mxu0 0
            %929 = vmatprep.subr.bf16.mxu0 0
            %930 = vmatpush1.bf16.msra.mxu0 0
            %931 = vmatprep.subr.bf16.mxu0 0
            %932 = vmatpush1.bf16.msra.mxu0 0
            %933 = vmatprep.subr.bf16.mxu0 0
            %934 = vmatpush1.bf16.msra.mxu0 0
            %935 = vmatprep.subr.bf16.mxu0 0
            %936 = vmatpush1.bf16.msra.mxu0 0
            %937 = vmatprep.mubr.bf16.mxu0 0
            %938 = vmatmul.mubr.bf16.gmra.mrb[0].mxu0 %v900
            %v939 = vpop.f32.mrb[0].mxu0
            %v940 = vadd.f32 0.0, %v939
            %v941 = vpop.f32.mrb[0].mxu0
            %v942 = vpop.f32.mrb[0].mxu0
            %v943 = vadd.f32 0.0, %v942
            %v944 = vpop.f32.mrb[0].mxu0
            %945 = vmatprep.mubr.bf16.mxu0 0
            %946 = vmatmul.mubr.bf16.gmra.mrb[0].mxu0 %v903
            %v947 = vpop.f32.mrb[0].mxu0
            %v948 = vadd.f32 0.0, %v947
            %v949 = vpop.f32.mrb[0].mxu0
            %v950 = vpop.f32.mrb[0].mxu0
            %v951 = vadd.f32 0.0, %v950
            %v952 = vpop.f32.mrb[0].mxu0
            %953 = vdwg.mxu0
            %v954 = vpack.c.bf16 %v943, %v940
            %v955 = vpack.c.bf16 %v951, %v948
            %956 = vst [vmem:[#allocation6] sm:$0xff] %v954
            %957 = vst [vmem:[#allocation6 + $0x8] sm:$0xff] %v955
            %v958 = vld [vmem:[%s6] sm:$0x1]
            %v960 = vlaneseq
            %v961 = vshrl.u32 %v960, 7
            %v962 = vsub.s32 0, %v961
            %v963 = vrot.slane %v958, %v962
            %v965 = vmul.f32 %v940, %v963
            %v966 = vmul.f32 %v943, %v963
            %v967 = vmul.f32 %v948, %v963
            %v968 = vmul.f32 %v951, %v963
            %969 = vadd.xlane.f32.xlu0 %v965
            %v970 = vpop.xlane.xlu0 %969
            %971 = vadd.xlane.f32.xlu0 %v966
            %v972 = vpop.xlane.xlu0 %971
            %973 = vadd.xlane.f32.xlu0 %v967
            %v974 = vpop.xlane.xlu0 %973
            %975 = vadd.xlane.f32.xlu0 %v968
            %v976 = vpop.xlane.xlu0 %975
            %vm977 = vcmask 7168
            %978 = vst.msk [vmem:[#allocation7] sm:$0xff] %vm977, %v970
            %979 = vst.msk [vmem:[#allocation7 + $0x8] sm:$0xff] %vm977, %v972
            %980 = vst.msk [vmem:[#allocation7 + $0x10] sm:$0xff] %vm977, %v974
            %981 = vst.msk [vmem:[#allocation7 + $0x18] sm:$0xff] %vm977, %v976
            %v982 = vld [vmem:[%s7] sm:$0x1]
            %v984 = vlaneseq
            %v985 = vshrl.u32 %v984, 7
            %v986 = vsub.s32 0, %v985
            %v987 = vrot.slane %v982, %v986
            %v989 = vmul.f32 %v940, %v987
            %v990 = vmul.f32 %v943, %v987
            %v991 = vmul.f32 %v948, %v987
            %v992 = vmul.f32 %v951, %v987
            %993 = vadd.xlane.f32.xlu0 %v989
            %v994 = vpop.xlane.xlu0 %993
            %995 = vadd.xlane.f32.xlu0 %v990
            %v996 = vpop.xlane.xlu0 %995
            %997 = vadd.xlane.f32.xlu0 %v991
            %v998 = vpop.xlane.xlu0 %997
            %999 = vadd.xlane.f32.xlu0 %v992
            %v1000 = vpop.xlane.xlu0 %999
            %1001 = vxpose.xlu0.b32.start [1/16] %v994, 128
            %1002 = vxpose.xlu0.b32.cont [2/16] %v996, 128
            %1003 = vxpose.xlu0.b32.cont [3/16] %v998, 128
            %1004 = vxpose.xlu0.b32.cont [4/16] %v1000, 128
            %1005 = vxpose.xlu0.b32.cont [5/16] 0.0, 128
            %1006 = vxpose.xlu0.b32.cont [6/16] 0.0, 128
            %1007 = vxpose.xlu0.b32.cont [7/16] 0.0, 128
            %1008 = vxpose.xlu0.b32.cont [8/16] 0.0, 128
            %1009 = vxpose.xlu0.b32.cont [9/16] 0.0, 128
            %1010 = vxpose.xlu0.b32.cont [10/16] 0.0, 128
            %1011 = vxpose.xlu0.b32.cont [11/16] 0.0, 128
            %1012 = vxpose.xlu0.b32.cont [12/16] 0.0, 128
            %1013 = vxpose.xlu0.b32.cont [13/16] 0.0, 128
            %1014 = vxpose.xlu0.b32.cont [14/16] 0.0, 128
            %1015 = vxpose.xlu0.b32.cont [15/16] 0.0, 128
            %1016 = vxpose.xlu0.b32.end [16/16] 0.0, 128
            %v1017 = vpop.trf.xlu0
            %v1018 = vpop.trf.xlu0
            %v1019 = vpop.trf.xlu0
            %v1020 = vpop.trf.xlu0
            %v1021 = vpop.trf.xlu0
            %v1022 = vpop.trf.xlu0
            %v1023 = vpop.trf.xlu0
            %v1024 = vpop.trf.xlu0
            %v1025 = vpop.trf.xlu0
            %v1026 = vpop.trf.xlu0
            %v1027 = vpop.trf.xlu0
            %v1028 = vpop.trf.xlu0
            %v1029 = vpop.trf.xlu0
            %v1030 = vpop.trf.xlu0
            %v1031 = vpop.trf.xlu0
            %v1032 = vpop.trf.xlu0
            %vm1033 = vcmask 253952
            %1034 = vst.msk [vmem:[#allocation8] sm:$0x1] %vm1033, %v1017
          $region80: #{tpu_custom_call.1} parent=75 // pred_fallthru
            _
          %s1035 = scalar_lea.vmem [#allocation7], %s387
          %v1036 = vld [vmem:[%s1035] sm:$0xff]
          %v1037 = vld [vmem:[%s1035 + $0x8] sm:$0xff]
          %v1038 = vld [vmem:[#allocation8] sm:$0x1]
          %1040 = vset.pattern.permute.xlu0 0
          %1041 = vperm.xlu0 %1040, %v1036
          %v1042 = vpop.permute.xlu0 %1041
          %1045 = vset.pattern.permute.xlu0 0
          %1046 = vperm.xlu0 %1045, %v1037
          %v1047 = vpop.permute.xlu0 %1046
          %v1050 = vlaneseq
          %v1051 = vshrl.u32 %v1050, 7
          %v1052 = vsub.s32 0, %v1051
          %v1053 = vrot.slane %v1038, %v1052
          %v1055 = vadd.f32 %v1042, %v1053
          %v1056 = vadd.f32 %v1047, %v1053
          %v1057 = vmul.f32 %v1055, 0.2
          %v1058 = vmul.f32 %v1056, 0.2
          %v1059 = vmax.f32 %v1055, %v1057
          %v1060 = vmax.f32 %v1056, %v1058
          %v1061 = vunpack.c.l.bf16 %v388
          %v1062 = vunpack.c.l.bf16 %v389
          %v1063 = vadd.f32 %v1059, %v1061
          %v1064 = vadd.f32 %v1060, %v1062
          %vm1065 = vcmask 261120
          %v1066 = vsel %vm1065, %v1063, -inf
          %1067 = vmax.xlane.f32.xlu0 %v1066
          %v1068 = vpop.xlane.xlu0 %1067
          %v1069 = vsel %vm1065, %v1064, -inf
          %1070 = vmax.xlane.f32.xlu0 %v1069
          %v1071 = vpop.xlane.xlu0 %1070
          %v1072 = vsub.f32 %v1063, %v1068
          %v1073 = vsub.f32 %v1064, %v1071
          %v1074 = vmul.f32 %v1072, 1.442695
          %v1075 = vpow.pop %v1074
          %v1076 = vmul.f32 %v1073, 1.442695
          %v1077 = vpow.pop %v1076
          %v1078 = vsel %vm1065, %v1075, 0.0
          %1079 = vadd.xlane.f32.xlu0 %v1078
          %v1080 = vpop.xlane.xlu0 %1079
          %v1081 = vsel %vm1065, %v1077, 0.0
          %1082 = vadd.xlane.f32.xlu0 %v1081
          %v1083 = vpop.xlane.xlu0 %1082
          %v1084 = vrcp.pop %v1080
          %v1085 = vrcp.pop %v1083
          %v1086 = vmul.f32 %v1075, %v1084
          %v1087 = vmul.f32 %v1077, %v1085
          %v1088 = vpack.c.bf16 %v1087, %v1086
          %v1089 = vld [vmem:[#allocation6] sm:$0xff]
          %v1090 = vld [vmem:[#allocation6 + $0x8] sm:$0xff]
          %v1091 = vld [vmem:[%s8] sm:$0x1]
          %v1093 = vlaneseq
          %v1094 = vshrl.u32 %v1093, 7
          %v1095 = vsub.s32 0, %v1094
          %v1096 = vrot.slane %v1091, %v1095
          %v1099 = vsel %vm1065, %v1088, 0
          %1101 = vmatprep.subr.bf16.mxu0 0
          %1102 = vmatpush1.bf16.msra.mxu0 %v1089
          %1103 = vmatprep.subr.bf16.mxu0 0
          %1104 = vmatpush1.bf16.msra.mxu0 %v1090
          %1105 = vmatprep.subr.bf16.mxu0 0
          %1106 = vmatpush1.bf16.msra.mxu0 0
          %1107 = vmatprep.subr.bf16.mxu0 0
          %1108 = vmatpush1.bf16.msra.mxu0 0
          %1109 = vmatprep.subr.bf16.mxu0 0
          %1110 = vmatpush1.bf16.msra.mxu0 0
          %1111 = vmatprep.subr.bf16.mxu0 0
          %1112 = vmatpush1.bf16.msra.mxu0 0
          %1113 = vmatprep.subr.bf16.mxu0 0
          %1114 = vmatpush1.bf16.msra.mxu0 0
          %1115 = vmatprep.subr.bf16.mxu0 0
          %1116 = vmatpush1.bf16.msra.mxu0 0
          %1117 = vmatprep.subr.bf16.mxu0 0
          %1118 = vmatpush1.bf16.msra.mxu0 0
          %1119 = vmatprep.subr.bf16.mxu0 0
          %1120 = vmatpush1.bf16.msra.mxu0 0
          %1121 = vmatprep.subr.bf16.mxu0 0
          %1122 = vmatpush1.bf16.msra.mxu0 0
          %1123 = vmatprep.subr.bf16.mxu0 0
          %1124 = vmatpush1.bf16.msra.mxu0 0
          %1125 = vmatprep.subr.bf16.mxu0 0
          %1126 = vmatpush1.bf16.msra.mxu0 0
          %1127 = vmatprep.subr.bf16.mxu0 0
          %1128 = vmatpush1.bf16.msra.mxu0 0
          %1129 = vmatprep.subr.bf16.mxu0 0
          %1130 = vmatpush1.bf16.msra.mxu0 0
          %1131 = vmatprep.subr.bf16.mxu0 0
          %1132 = vmatpush1.bf16.msra.mxu0 0
          %1133 = vmatprep.mubr.bf16.mxu0 0
          %1134 = vmatmul.mubr.bf16.gmra.mrb[0].mxu0 %v1099
          %v1135 = vpop.f32.mrb[0].mxu0
          %v1136 = vadd.f32 %v1096, %v1135
          %v1137 = vpop.f32.mrb[0].mxu0
          %v1138 = vpop.f32.mrb[0].mxu0
          %v1139 = vadd.f32 %v1096, %v1138
          %v1140 = vpop.f32.mrb[0].mxu0
          %1141 = vdwg.mxu0
          %1142 = vst [vmem:[%s378] sm:$0xff] %v1136
          %1143 = vst [vmem:[%s378 + $0x8] sm:$0xff] %v1139
        $region76: #{tpu_custom_call.1} parent=59 // pred_fallthru
          _
        %s1144 = sand.u32 %s260, 1
        %s1145 = scalar_lea.sflag [#allocation11], %s1144
        %s1146 = sand.u32 %s260, 1
        %s1147 = smul.addr %s1146, 16
        %s1148 = scalar_lea.vmem [#allocation12], %s1147
        // Predicated region
        $region81: #{tpu_custom_call.1} parent=59 // pred_check
          %p1149 = pneg %p270
        $region82: #{tpu_custom_call.1} parent=59 // pred_check_branch
          %1151 = sbr.rel (%p1149) target = $region84
        $region83: #{tpu_custom_call.1} parent=59 // pred_region
          %s1152 = smul.u32 2, %s30
          %s1154 = ssub.s32 256, 256
          %1155 = vsyncadd %s1145, %s1154
          %s1156 = smul.addr %s1152, 128
          %s1157 = scalar_lea.hbm %s10, %s1156
          %s1158 = sshll.u32 %s1148, 4
          %s1159 = int_to_ptr.vmem [resolvable:$true] %s1158
          %1164 = dma.vmem_to_hbm [thread:$0]  %s1159, 256, %s1157, %s1145, 128, 128, 8
        $region84: #{tpu_custom_call.1} parent=59 // pred_fallthru
          _
      $region60: #{tpu_custom_call.1} parent=5 // pred_fallthru
        _
      %p1165 = scmp.le.s32.totalorder 2, %s20
      // Predicated region
      $region85: #{tpu_custom_call.1} parent=5 // pred_check
        %p1166 = pneg %p1165
      $region86: #{tpu_custom_call.1} parent=5 // pred_check_branch
        %1168 = sbr.rel (%p1166) target = $region88
      $region87: #{tpu_custom_call.1} parent=5 // pred_region
        %s1169 = ssub.s32 %s20, 2
        // Predicated region
        $region89: #{tpu_custom_call.1} parent=87 // pred_check
          %p1170 = pneg %p276
        $region90: #{tpu_custom_call.1} parent=87 // pred_check_branch
          %1172 = sbr.rel (%p1170) target = $region92
        $region91: #{tpu_custom_call.1} parent=87 // pred_region
          %s1173 = sand.u32 %s261, 1
          %s1174 = scalar_lea.sflag [#allocation11], %s1173
          %s1175 = sand.u32 %s261, 1
          %s1176 = smul.addr %s1175, 16
          %s1177 = scalar_lea.vmem [#allocation12], %s1176
          %1178 = dma.done %s1174, 256
        $region92: #{tpu_custom_call.1} parent=87 // pred_fallthru
          _
      $region88: #{tpu_custom_call.1} parent=5 // pred_fallthru
        _
    $region6: #{tpu_custom_call.1} parent=1 // loop_footer
      %s24 = sadd.s32 1, %s20
    $region7: #{tpu_custom_call.1} parent=1 // loop_footer_branch
      %19 = sbr.rel target = $region3
    $region8: #{tpu_custom_call.1} parent=1 // loop_exit
      _
    %1179 = vsyncpa [#allocation10], 1
    %s1180 = scalar_lea.sflag [#allocation10], 1
    %1181 = vsyncpa %s1180, 1
    %1182 = vsyncpa [#allocation11], 1
    %s1183 = scalar_lea.sflag [#allocation11], 1
    %1184 = vsyncpa %s1183, 1

</llo_original>
